<compile_context>
chip_gen: v6e
topology: v6e:2x2x1
jax: 0.10.0
libtpu: 0.0.40
codegen_flags: <defaults>
</compile_context>

<pallas_src>
import math

import jax
import jax.numpy as jnp
from jax.experimental import pallas as pl
from jax.experimental.pallas import tpu as pltpu

TEMPERATURE = 0.05
INV_TEMPERATURE = 1.0 / TEMPERATURE
HIDDEN = 512


def _round_up(x, m):
    return ((x + m - 1) // m) * m


def _disc_kernel(x_ref, w2_ref, b2_ref, w3_ref, b3_ref, o_ref):
    # fc2: Linear(512, 512) on the MXU. x arrives f32 from HBM and is cast to
    # bf16 on the VPU here (hidden under the MXU); f32 accumulation.
    x_bf16 = x_ref[...].astype(jnp.bfloat16)                    # (TB, 512)
    h = jnp.dot(x_bf16, w2_ref[...], preferred_element_type=jnp.float32)
    h = jnp.maximum(h + b2_ref[...], 0.0)                       # +b2, ReLU

    # fc3: Linear(512, 1) + Sigmoid. Fold 1/temperature into the (1, 512) w3
    # row once per step, then VPU multiply + cross-lane (XLU) reduction
    # instead of an N=1 MXU matmul.
    w3_scaled = w3_ref[...] * INV_TEMPERATURE                   # (1, 512)
    logits = jnp.sum(h * w3_scaled, axis=-1, keepdims=True)     # (TB, 1)
    logits = logits + b3_ref[0, 0]                              # scalar (SMEM)
    o_ref[...] = jax.nn.sigmoid(logits)


def trans_disc_forward(x, w2, b2, w3_row, b3, reverse=False, eta=0.1,
                       block_b=2048):
    """Pallas implementation of Trans_disc.forward (forward pass only).

    x:      (B, 512)   float32 (read as f32; cast to bf16 inside the kernel)
    w2:     (512, 512) float32, (in, out) layout -> cast to bf16 (one-time)
    b2:     (1, 512)   float32
    w3_row: (1, 512)   float32 (fc3 weight as a row; PyTorch (out=1, in=512))
    b3:     (1, 1)     float32
    returns (B, 1) float32
    """
    del reverse, eta  # grad_reverse is identity in the forward pass
    B = x.shape[0]

    # Batch tile: multiple of 8 (sublane), capped at block_b (default 2048 ->
    # v7x VMEM-safe), and capped at ~half the batch so the grid has >= 2
    # blocks whenever B > 8 (keeps both v7x TensorCores busy via the
    # "parallel" batch axis).
    half = _round_up(pl.cdiv(_round_up(B, 8), 2), 8)
    TB = max(8, min(block_b, half))
    num_blocks = pl.cdiv(B, TB)  # last tile may overhang; edge writes masked

    # One-time small casts (w2 is 512 KiB in bf16 and stays VMEM-resident).
    w2_bf16 = w2.astype(jnp.bfloat16)
    b2 = b2.astype(jnp.float32)
    w3_row = w3_row.astype(jnp.float32)
    b3 = b3.astype(jnp.float32)

    cost = pl.CostEstimate(
        flops=2 * B * HIDDEN * HIDDEN + 3 * B * HIDDEN,
        transcendentals=B,
        bytes_accessed=(B * HIDDEN * 4            # x (f32, read once)
                        + HIDDEN * HIDDEN * 2     # w2 (bf16)
                        + HIDDEN * 4 + HIDDEN * 4 + 4   # b2, w3, b3
                        + B * 4),                 # output
    )

    def _call(single_buffer_weights):
        if single_buffer_weights:
            # Constant-index blocks are VMEM-resident; one pipeline buffer is
            # enough -> reclaims VMEM vs. the default double buffer.
            def resident(shape):
                return pl.BlockSpec(shape, lambda i: (0, 0),
                                    pipeline_mode=pl.Buffered(1))
        else:
            def resident(shape):
                return pl.BlockSpec(shape, lambda i: (0, 0))

        return pl.pallas_call(
            _disc_kernel,
            out_shape=jax.ShapeDtypeStruct((B, 1), jnp.float32),
            grid_spec=pltpu.PrefetchScalarGridSpec(
                num_scalar_prefetch=0,
                grid=(num_blocks,),
                in_specs=[
                    # x: blocked over batch -> double-buffered per grid step.
                    pl.BlockSpec((TB, HIDDEN), lambda i: (i, 0)),
                    # Weights / biases: constant index_map -> VMEM resident.
                    resident((HIDDEN, HIDDEN)),
                    resident((1, HIDDEN)),
                    resident((1, HIDDEN)),
                    # b3: scalar in SMEM (avoids a padded (1,1) VMEM tile).
                    pl.BlockSpec(memory_space=pltpu.MemorySpace.SMEM),
                ],
                out_specs=pl.BlockSpec((TB, 1), lambda i: (i, 0)),
            ),
            compiler_params=pltpu.CompilerParams(
                dimension_semantics=("parallel",),
            ),
            cost_estimate=cost,
        )(x, w2_bf16, b2, w3_row, b3)

    try:
        return _call(single_buffer_weights=True)
    except Exception:
        # pl.Buffered(1) on constant-index blocks not supported by this
        # jax/Mosaic build -> fall back to default (double) buffering.
        return _call(single_buffer_weights=False)


def _kaiming_normal(key, fan_in, shape):
    # PyTorch kaiming_normal_ default: fan_in mode, gain = sqrt(2) (ReLU).
    std = math.sqrt(2.0 / fan_in)
    return jax.random.normal(key, shape, dtype=jnp.float32) * std


def init_params(key, z_dim=10):
    del z_dim  # pos_embedding / cls_token are unused in the forward pass
    k2, k3 = jax.random.split(key, 2)
    # PyTorch weight is (out, in); kernel uses x @ W with W in (in, out).
    w2 = jnp.transpose(_kaiming_normal(k2, HIDDEN, (HIDDEN, HIDDEN)))  # (512, 512)
    b2 = jnp.zeros((1, HIDDEN), dtype=jnp.float32)
    w3_row = _kaiming_normal(k3, HIDDEN, (1, HIDDEN))                  # (1, 512)
    b3 = jnp.zeros((1, 1), dtype=jnp.float32)
    return w2, b2, w3_row, b3


def reference_forward_bf16(x, w2, b2, w3_row, b3):
    """Reference matching the kernel's bf16-matmul / f32-accumulate math."""
    h = jnp.dot(x.astype(jnp.bfloat16), w2.astype(jnp.bfloat16),
                preferred_element_type=jnp.float32) + b2
    h = jnp.maximum(h, 0.0) * INV_TEMPERATURE
    logits = jnp.sum(h * w3_row, axis=-1, keepdims=True) + b3[0, 0]
    return jax.nn.sigmoid(logits)


def reference_forward_f32(x, w2, b2, w3_row, b3):
    """Full-f32 reference of the original PyTorch module."""
    h = jnp.maximum(x @ w2 + b2, 0.0) / TEMPERATURE
    return jax.nn.sigmoid(h @ jnp.transpose(w3_row) + b3)


if __name__ == "__main__":
    key = jax.random.PRNGKey(0)
    kx, kp, kb2, kb3 = jax.random.split(key, 4)

    B = 20  # small, non-multiple-of-8 batch; feature dim 512 fixed by module
    x = jax.random.normal(kx, (B, HIDDEN), dtype=jnp.float32)
    w2, b2, w3_row, b3 = init_params(kp, z_dim=10)
    # Use non-zero biases so the bias code paths are actually exercised.
    b2 = 0.1 * jax.random.normal(kb2, (1, HIDDEN), dtype=jnp.float32)
    b3 = 0.1 * jax.random.normal(kb3, (1, 1), dtype=jnp.float32)

    ref_bf16 = reference_forward_bf16(x, w2, b2, w3_row, b3)
    ref_f32 = reference_forward_f32(x, w2, b2, w3_row, b3)

    # Default path: TB=16, grid=(2,) -> exercises the >=2-block split
    # (megacore-friendly) and the overhanging last tile (no wrapper padding).
    out = jax.block_until_ready(trans_disc_forward(x, w2, b2, w3_row, b3))
    assert out.shape == (B, 1), out.shape
    assert jnp.allclose(out, ref_bf16, atol=1e-3, rtol=1e-3), (
        f"max err vs bf16 ref {jnp.max(jnp.abs(out - ref_bf16))}"
    )
    assert jnp.allclose(out, ref_f32, atol=5e-2, rtol=5e-2), (
        f"max err vs f32 ref {jnp.max(jnp.abs(out - ref_f32))}"
    )

    # Smaller tile: TB=8 -> grid=(3,), exercises resident weights across more
    # grid steps plus the masked edge write of the final block.
    out_tiled = jax.block_until_ready(
        trans_disc_forward(x, w2, b2, w3_row, b3, block_b=8))
    assert out_tiled.shape == (B, 1), out_tiled.shape
    assert jnp.allclose(out_tiled, ref_bf16, atol=1e-3, rtol=1e-3), (
        f"max err (tiled) {jnp.max(jnp.abs(out_tiled - ref_bf16))}"
    )

    print("KERNEL_OK")
</pallas_src>

<mosaic_0001>
module attributes {stable_mosaic.version = 11 : i64} {
  func.func @_disc_kernel(%arg0: i32, %arg1: memref<16x512xf32, #tpu.memory_space<vmem>>, %arg2: memref<512x512xbf16, #tpu.memory_space<vmem>>, %arg3: memref<1x512xf32, #tpu.memory_space<vmem>>, %arg4: memref<1x512xf32, #tpu.memory_space<vmem>>, %arg5: memref<1x1xf32, #tpu.memory_space<smem>>, %arg6: memref<16x1xf32, #tpu.memory_space<vmem>>) attributes {dimension_semantics = [#tpu.dimension_semantics<parallel>], iteration_bounds = array<i64: 2>, scalar_prefetch = 0 : i64, scratch_operands = 0 : i64, tpu.core_type = #tpu.core_type<tc>, window_params = [{transform_indices = @transform_0, window_bounds = array<i64: 16, 512>}, {pipeline_mode = #tpu.pipeline_mode<synchronous>, transform_indices = @transform_1, window_bounds = array<i64: 512, 512>}, {pipeline_mode = #tpu.pipeline_mode<synchronous>, transform_indices = @transform_2, window_bounds = array<i64: 1, 512>}, {pipeline_mode = #tpu.pipeline_mode<synchronous>, transform_indices = @transform_3, window_bounds = array<i64: 1, 512>}, {transform_indices = @transform_4, window_bounds = array<i64: 1, 1>}, {transform_indices = @transform_5, window_bounds = array<i64: 16, 1>}]} {
    %c0 = arith.constant 0 : index
    %c0_0 = arith.constant 0 : index
    %0 = vector.load %arg1[%c0, %c0_0] : memref<16x512xf32, #tpu.memory_space<vmem>>, vector<16x512xf32>
    %1 = arith.truncf %0 : vector<16x512xf32> to vector<16x512xbf16>
    %c0_1 = arith.constant 0 : index
    %c0_2 = arith.constant 0 : index
    %2 = vector.load %arg2[%c0_1, %c0_2] : memref<512x512xbf16, #tpu.memory_space<vmem>>, vector<512x512xbf16>
    %cst = arith.constant dense<0.000000e+00> : vector<16x512xf32>
    %3 = tpu.matmul %1, %2, %cst {dimension_numbers = #tpu.dot_dimension_numbers<[1], [0], [0], [1], [0, 0, 1, 1], [], []>} : vector<16x512xbf16>, vector<512x512xbf16>, vector<16x512xf32> -> vector<16x512xf32>
    %c0_3 = arith.constant 0 : index
    %c0_4 = arith.constant 0 : index
    %4 = vector.load %arg3[%c0_3, %c0_4] : memref<1x512xf32, #tpu.memory_space<vmem>>, vector<1x512xf32>
    %5 = vector.broadcast %4 : vector<1x512xf32> to vector<16x512xf32>
    %6 = arith.addf %3, %5 : vector<16x512xf32>
    %cst_5 = arith.constant 0.000000e+00 : f32
    %7 = vector.broadcast %cst_5 : f32 to vector<16x512xf32>
    %8 = arith.maximumf %6, %7 : vector<16x512xf32>
    %c0_6 = arith.constant 0 : index
    %c0_7 = arith.constant 0 : index
    %9 = vector.load %arg4[%c0_6, %c0_7] : memref<1x512xf32, #tpu.memory_space<vmem>>, vector<1x512xf32>
    %cst_8 = arith.constant 2.000000e+01 : f32
    %10 = vector.broadcast %cst_8 : f32 to vector<1x512xf32>
    %11 = arith.mulf %9, %10 : vector<1x512xf32>
    %12 = vector.broadcast %11 : vector<1x512xf32> to vector<16x512xf32>
    %13 = arith.mulf %8, %12 : vector<16x512xf32>
    %cst_9 = arith.constant dense<0.000000e+00> : vector<16xf32>
    %14 = vector.multi_reduction <add>, %13, %cst_9 [1] : vector<16x512xf32> to vector<16xf32>
    %15 = vector.shape_cast %14 : vector<16xf32> to vector<16x1xf32>
    %c0_10 = arith.constant 0 : index
    %c0_11 = arith.constant 0 : index
    %16 = memref.load %arg5[%c0_10, %c0_11] : memref<1x1xf32, #tpu.memory_space<smem>>
    %17 = vector.broadcast %16 : f32 to vector<16x1xf32>
    %18 = arith.addf %15, %17 : vector<16x1xf32>
    %19 = arith.negf %18 : vector<16x1xf32>
    %20 = math.exp %19 : vector<16x1xf32>
    %cst_12 = arith.constant 1.000000e+00 : f32
    %21 = vector.broadcast %cst_12 : f32 to vector<16x1xf32>
    %22 = arith.addf %21, %20 : vector<16x1xf32>
    %23 = arith.divf %21, %22 : vector<16x1xf32>
    %c0_13 = arith.constant 0 : index
    %c0_14 = arith.constant 0 : index
    %24 = vector.load %arg6[%c0_13, %c0_14] : memref<16x1xf32, #tpu.memory_space<vmem>>, vector<16x1xf32>
    tpu.vector_store %arg6[%c0_13, %c0_14], %23 {strides = array<i32>} : memref<16x1xf32, #tpu.memory_space<vmem>>, vector<16x1xf32>,
    return
  }
  func.func @transform_0(%arg0: i32) -> (i32, i32) {
    %c0_i32 = arith.constant 0 : i32
    %c0_i32_0 = arith.constant 0 : i32
    return %arg0, %c0_i32 : i32, i32
  }
  func.func @transform_1(%arg0: i32) -> (i32, i32) {
    %c0_i32 = arith.constant 0 : i32
    %c0_i32_0 = arith.constant 0 : i32
    %c0_i32_1 = arith.constant 0 : i32
    return %c0_i32, %c0_i32_0 : i32, i32
  }
  func.func @transform_2(%arg0: i32) -> (i32, i32) {
    %c0_i32 = arith.constant 0 : i32
    %c0_i32_0 = arith.constant 0 : i32
    %c0_i32_1 = arith.constant 0 : i32
    return %c0_i32, %c0_i32_0 : i32, i32
  }
  func.func @transform_3(%arg0: i32) -> (i32, i32) {
    %c0_i32 = arith.constant 0 : i32
    %c0_i32_0 = arith.constant 0 : i32
    %c0_i32_1 = arith.constant 0 : i32
    return %c0_i32, %c0_i32_0 : i32, i32
  }
  func.func @transform_4(%arg0: i32) -> (i32, i32) {
    %c0_i32 = arith.constant 0 : i32
    %c0_i32_0 = arith.constant 0 : i32
    %c0_i32_1 = arith.constant 0 : i32
    return %c0_i32, %c0_i32_0 : i32, i32
  }
  func.func @transform_5(%arg0: i32) -> (i32, i32) {
    %c0_i32 = arith.constant 0 : i32
    %c0_i32_0 = arith.constant 0 : i32
    return %arg0, %c0_i32 : i32, i32
  }
}

module attributes {stable_mosaic.version = 11 : i64} {
  func.func @_disc_kernel(%arg0: i32, %arg1: memref<16x512xf32, #tpu.memory_space<vmem>>, %arg2: memref<512x512xbf16, #tpu.memory_space<vmem>>, %arg3: memref<1x512xf32, #tpu.memory_space<vmem>>, %arg4: memref<1x512xf32, #tpu.memory_space<vmem>>, %arg5: memref<1x1xf32, #tpu.memory_space<smem>>, %arg6: memref<16x1xf32, #tpu.memory_space<vmem>>) attributes {dimension_semantics = [#tpu.dimension_semantics<parallel>], iteration_bounds = array<i64: 2>, scalar_prefetch = 0 : i64, scratch_operands = 0 : i64, tpu.core_type = #tpu.core_type<tc>, window_params = [{transform_indices = @transform_0, window_bounds = array<i64: 16, 512>}, {pipeline_mode = #tpu.pipeline_mode<synchronous>, transform_indices = @transform_1, window_bounds = array<i64: 512, 512>}, {pipeline_mode = #tpu.pipeline_mode<synchronous>, transform_indices = @transform_2, window_bounds = array<i64: 1, 512>}, {pipeline_mode = #tpu.pipeline_mode<synchronous>, transform_indices = @transform_3, window_bounds = array<i64: 1, 512>}, {transform_indices = @transform_4, window_bounds = array<i64: 1, 1>}, {transform_indices = @transform_5, window_bounds = array<i64: 16, 1>}]} {
    %c0 = arith.constant 0 : index
    %c0_0 = arith.constant 0 : index
    %0 = vector.load %arg1[%c0, %c0_0] : memref<16x512xf32, #tpu.memory_space<vmem>>, vector<16x512xf32>
    %1 = arith.truncf %0 : vector<16x512xf32> to vector<16x512xbf16>
    %c0_1 = arith.constant 0 : index
    %c0_2 = arith.constant 0 : index
    %2 = vector.load %arg2[%c0_1, %c0_2] : memref<512x512xbf16, #tpu.memory_space<vmem>>, vector<512x512xbf16>
    %cst = arith.constant dense<0.000000e+00> : vector<16x512xf32>
    %3 = tpu.matmul %1, %2, %cst {dimension_numbers = #tpu.dot_dimension_numbers<[1], [0], [0], [1], [0, 0, 1, 1], [], []>} : vector<16x512xbf16>, vector<512x512xbf16>, vector<16x512xf32> -> vector<16x512xf32>
    %c0_3 = arith.constant 0 : index
    %c0_4 = arith.constant 0 : index
    %4 = vector.load %arg3[%c0_3, %c0_4] : memref<1x512xf32, #tpu.memory_space<vmem>>, vector<1x512xf32>
    %5 = vector.broadcast %4 : vector<1x512xf32> to vector<16x512xf32>
    %6 = arith.addf %3, %5 : vector<16x512xf32>
    %cst_5 = arith.constant 0.000000e+00 : f32
    %7 = vector.broadcast %cst_5 : f32 to vector<16x512xf32>
    %8 = arith.maximumf %6, %7 : vector<16x512xf32>
    %c0_6 = arith.constant 0 : index
    %c0_7 = arith.constant 0 : index
    %9 = vector.load %arg4[%c0_6, %c0_7] : memref<1x512xf32, #tpu.memory_space<vmem>>, vector<1x512xf32>
    %cst_8 = arith.constant 2.000000e+01 : f32
    %10 = vector.broadcast %cst_8 : f32 to vector<1x512xf32>
    %11 = arith.mulf %9, %10 : vector<1x512xf32>
    %12 = vector.broadcast %11 : vector<1x512xf32> to vector<16x512xf32>
    %13 = arith.mulf %8, %12 : vector<16x512xf32>
    %cst_9 = arith.constant dense<0.000000e+00> : vector<16xf32>
    %14 = vector.multi_reduction <add>, %13, %cst_9 [1] : vector<16x512xf32> to vector<16xf32>
    %15 = vector.shape_cast %14 : vector<16xf32> to vector<16x1xf32>
    %c0_10 = arith.constant 0 : index
    %c0_11 = arith.constant 0 : index
    %16 = memref.load %arg5[%c0_10, %c0_11] : memref<1x1xf32, #tpu.memory_space<smem>>
    %17 = vector.broadcast %16 : f32 to vector<16x1xf32>
    %18 = arith.addf %15, %17 : vector<16x1xf32>
    %19 = arith.negf %18 : vector<16x1xf32>
    %20 = math.exp %19 : vector<16x1xf32>
    %cst_12 = arith.constant 1.000000e+00 : f32
    %21 = vector.broadcast %cst_12 : f32 to vector<16x1xf32>
    %22 = arith.addf %21, %20 : vector<16x1xf32>
    %23 = arith.divf %21, %22 : vector<16x1xf32>
    %c0_13 = arith.constant 0 : index
    %c0_14 = arith.constant 0 : index
    %24 = vector.load %arg6[%c0_13, %c0_14] : memref<16x1xf32, #tpu.memory_space<vmem>>, vector<16x1xf32>
    tpu.vector_store %arg6[%c0_13, %c0_14], %23 {strides = array<i32>} : memref<16x1xf32, #tpu.memory_space<vmem>>, vector<16x1xf32>,
    return
  }
  func.func @transform_0(%arg0: i32) -> (i32, i32) {
    %c0_i32 = arith.constant 0 : i32
    %c0_i32_0 = arith.constant 0 : i32
    return %arg0, %c0_i32 : i32, i32
  }
  func.func @transform_1(%arg0: i32) -> (i32, i32) {
    %c0_i32 = arith.constant 0 : i32
    %c0_i32_0 = arith.constant 0 : i32
    %c0_i32_1 = arith.constant 0 : i32
    return %c0_i32, %c0_i32_0 : i32, i32
  }
  func.func @transform_2(%arg0: i32) -> (i32, i32) {
    %c0_i32 = arith.constant 0 : i32
    %c0_i32_0 = arith.constant 0 : i32
    %c0_i32_1 = arith.constant 0 : i32
    return %c0_i32, %c0_i32_0 : i32, i32
  }
  func.func @transform_3(%arg0: i32) -> (i32, i32) {
    %c0_i32 = arith.constant 0 : i32
    %c0_i32_0 = arith.constant 0 : i32
    %c0_i32_1 = arith.constant 0 : i32
    return %c0_i32, %c0_i32_0 : i32, i32
  }
  func.func @transform_4(%arg0: i32) -> (i32, i32) {
    %c0_i32 = arith.constant 0 : i32
    %c0_i32_0 = arith.constant 0 : i32
    %c0_i32_1 = arith.constant 0 : i32
    return %c0_i32, %c0_i32_0 : i32, i32
  }
  func.func @transform_5(%arg0: i32) -> (i32, i32) {
    %c0_i32 = arith.constant 0 : i32
    %c0_i32_0 = arith.constant 0 : i32
    return %arg0, %c0_i32 : i32, i32
  }
}

</mosaic_0001>

<llo_original>
// kernel: tpu_custom_call.1
$region0: #{tpu_custom_call.1}
  #allocation0 [shape = 'u32[]', space=smem, size = 0x4, offset = 0x4, fixed_abs, tag = 'smem constant byte address 0x4 - core index']
  #allocation1 [shape = 'u32[144,128]{1,0:T(1,128)}', space=vmem, size = 0x12000, scoped, tag = 'internal scratch']
  #allocation2 [shape = 'f32[1,1]{1,0:T(1,128)S(6)}', space=smem, size = 0x200, scoped, tag = 'scoped memory for tpu_custom_call.1']
  %s0 = inlined_call_operand.hbm [shape: f32[20,512], index: 0, kind: input, shape index: {}]
  %s1 = inlined_call_operand.hbm [shape: bf16[512,512], index: 1, kind: input, shape index: {}]
  %s2 = inlined_call_operand.vmem [shape: f32[1,512], index: 2, kind: input, shape index: {}]
  %s3 = inlined_call_operand.hbm [shape: f32[1,512], index: 3, kind: input, shape index: {}]
  %s4 = inlined_call_operand.<no memory space> [shape: f32[1,1], index: 4, kind: input, shape index: {}]
  %s5 = inlined_call_operand.vmem [shape: f32[20,1], index: 5, kind: output, shape index: {}]
  %s6 = sld [smem:[#allocation0]]
  $region113: #{tpu_custom_call.1} parent=0
    _
  %s8 = ssub.s32 1, %s6
  %s9 = scalar_select 0, %s8, %s6
  %10 = sst [smem:[#allocation2]] %s4
  $region1: #{tpu_custom_call.1} parent=0
    #allocation3 [shape = 'u8[65536]{0}', space=vmem, size = 0x10000, scoped, tag = 'input window, operand 0']
    #allocation4 [shape = 's32[2]{0}', space=sflag, size = 0x8, scoped, tag = 'scoped memory for tpu_custom_call.1']
    #allocation5 [shape = 'u8[524288]{0}', space=vmem, size = 0x80000, scoped, tag = 'input window, operand 1, single buffered']
    #allocation6 [shape = 's32[1]{0}', space=sflag, size = 0x4, scoped, tag = 'scoped memory for tpu_custom_call.1']
    #allocation7 [shape = 'u8[2048]{0}', space=vmem, size = 0x800, scoped, tag = 'input window, operand 3, single buffered']
    #allocation8 [shape = 'u8[16384]{0}', space=vmem, size = 0x4000, scoped, tag = 'output window, operand 0']
    %11 = vsyncpa [#allocation4], 0
    %s12 = scalar_lea.sflag [#allocation4], 1
    %13 = vsyncpa %s12, 0
    %14 = vsyncpa [#allocation6], 0
    loop: start=0, step=1, limit=4
    $region2: #{tpu_custom_call.1} parent=1 // loop_pre_header
      _
    $region3: #{tpu_custom_call.1} parent=1 // loop_header
      %s16 = sphi 0, %s20
      %p17 = scmp.ge.s32.totalorder %s16, 4
      %s26 = sphi 0, %s28
      %s29 = sphi 0, %s26
      %s30 = sphi 0, %s29
      %s46 = sphi 0, %s30
      %s50 = sphi 0, %s50
      %s52 = sphi 0, %s50
      %s53 = sphi 0, %s52
      %s67 = sphi 0, %s53
      %s71 = sphi 0, %s71
      %s73 = sphi 0, %s71
      %s74 = sphi 0, %s73
      %s88 = sphi 0, %s74
      %s92 = sphi 0, %s92
      %s94 = sphi 0, %s92
      %s95 = sphi 0, %s94
      %s109 = sphi 0, %s95
      %s113 = sphi 0, %s113
      %s115 = sphi 0, %s113
      %s116 = sphi 0, %s115
      %s130 = sphi 0, %s116
      %s136 = sphi 0, %s138
      %s139 = sphi 0, %s136
      %s140 = sphi 0, %s139
      %s156 = sphi 0, %s140
    $region4: #{tpu_custom_call.1} parent=1 // loop_header_branch
      %19 = sbr.rel (%p17) target = $region8
    $region5: #{tpu_custom_call.1} parent=1 // loop_body
      %s21 = ssub.s32 %s16, 1
      %s22 = ssub.s32 %s16, 2
      %s23 = sadd.s32 %s16, 1
      %s24 = ssub.s32 %s16, %s23
      %p25 = scmp.eq.s32.totalorder %s24, 0
      %s27 = sadd.s32 %s26, 1
      %s28 = scalar_select %p25, %s26, %s27
      %p31 = pneg %p25
      %p32 = scmp.eq.s32.totalorder %s16, 1
      %p33 = por %p31, %p32
      %p34 = scmp.ne.s32.totalorder %s26, %s29
      %p35 = scmp.eq.s32.totalorder %s16, 0
      %p36 = por %p34, %p35
      %p37 = scmp.ne.s32.totalorder %s26, %s29
      %p38 = scmp.eq.s32.totalorder %s21, 1
      %p39 = por %p37, %p38
      %p40 = scmp.ne.s32.totalorder %s29, %s30
      %p41 = scmp.eq.s32.totalorder %s21, 0
      %p42 = por %p40, %p41
      %p43 = scmp.ne.s32.totalorder %s29, %s30
      %p44 = scmp.eq.s32.totalorder %s22, 1
      %p45 = por %p43, %p44
      %p47 = scmp.ne.s32.totalorder %s30, %s46
      %p48 = scmp.eq.s32.totalorder %s22, 0
      %p49 = por %p47, %p48
      %s51 = sadd.s32 %s50, 1
      %p54 = scmp.eq.s32.totalorder %s16, 1
      %p55 = scmp.ne.s32.totalorder %s50, %s52
      %p56 = scmp.eq.s32.totalorder %s16, 0
      %p57 = por %p55, %p56
      %p58 = scmp.ne.s32.totalorder %s50, %s52
      %p59 = scmp.eq.s32.totalorder %s21, 1
      %p60 = por %p58, %p59
      %p61 = scmp.ne.s32.totalorder %s52, %s53
      %p62 = scmp.eq.s32.totalorder %s21, 0
      %p63 = por %p61, %p62
      %p64 = scmp.ne.s32.totalorder %s52, %s53
      %p65 = scmp.eq.s32.totalorder %s22, 1
      %p66 = por %p64, %p65
      %p68 = scmp.ne.s32.totalorder %s53, %s67
      %p69 = scmp.eq.s32.totalorder %s22, 0
      %p70 = por %p68, %p69
      %s72 = sadd.s32 %s71, 1
      %p75 = scmp.eq.s32.totalorder %s16, 1
      %p76 = scmp.ne.s32.totalorder %s71, %s73
      %p77 = scmp.eq.s32.totalorder %s16, 0
      %p78 = por %p76, %p77
      %p79 = scmp.ne.s32.totalorder %s71, %s73
      %p80 = scmp.eq.s32.totalorder %s21, 1
      %p81 = por %p79, %p80
      %p82 = scmp.ne.s32.totalorder %s73, %s74
      %p83 = scmp.eq.s32.totalorder %s21, 0
      %p84 = por %p82, %p83
      %p85 = scmp.ne.s32.totalorder %s73, %s74
      %p86 = scmp.eq.s32.totalorder %s22, 1
      %p87 = por %p85, %p86
      %p89 = scmp.ne.s32.totalorder %s74, %s88
      %p90 = scmp.eq.s32.totalorder %s22, 0
      %p91 = por %p89, %p90
      %s93 = sadd.s32 %s92, 1
      %p96 = scmp.eq.s32.totalorder %s16, 1
      %p97 = scmp.ne.s32.totalorder %s92, %s94
      %p98 = scmp.eq.s32.totalorder %s16, 0
      %p99 = por %p97, %p98
      %p100 = scmp.ne.s32.totalorder %s92, %s94
      %p101 = scmp.eq.s32.totalorder %s21, 1
      %p102 = por %p100, %p101
      %p103 = scmp.ne.s32.totalorder %s94, %s95
      %p104 = scmp.eq.s32.totalorder %s21, 0
      %p105 = por %p103, %p104
      %p106 = scmp.ne.s32.totalorder %s94, %s95
      %p107 = scmp.eq.s32.totalorder %s22, 1
      %p108 = por %p106, %p107
      %p110 = scmp.ne.s32.totalorder %s95, %s109
      %p111 = scmp.eq.s32.totalorder %s22, 0
      %p112 = por %p110, %p111
      %s114 = sadd.s32 %s113, 1
      %p117 = scmp.eq.s32.totalorder %s16, 1
      %p118 = scmp.ne.s32.totalorder %s113, %s115
      %p119 = scmp.eq.s32.totalorder %s16, 0
      %p120 = por %p118, %p119
      %p121 = scmp.ne.s32.totalorder %s113, %s115
      %p122 = scmp.eq.s32.totalorder %s21, 1
      %p123 = por %p121, %p122
      %p124 = scmp.ne.s32.totalorder %s115, %s116
      %p125 = scmp.eq.s32.totalorder %s21, 0
      %p126 = por %p124, %p125
      %p127 = scmp.ne.s32.totalorder %s115, %s116
      %p128 = scmp.eq.s32.totalorder %s22, 1
      %p129 = por %p127, %p128
      %p131 = scmp.ne.s32.totalorder %s116, %s130
      %p132 = scmp.eq.s32.totalorder %s22, 0
      %p133 = por %p131, %p132
      %s134 = ssub.s32 %s16, %s23
      %p135 = scmp.eq.s32.totalorder %s134, 0
      %s137 = sadd.s32 %s136, 1
      %s138 = scalar_select %p135, %s136, %s137
      %p141 = pneg %p135
      %p142 = scmp.eq.s32.totalorder %s16, 1
      %p143 = por %p141, %p142
      %p144 = scmp.ne.s32.totalorder %s136, %s139
      %p145 = scmp.eq.s32.totalorder %s16, 0
      %p146 = por %p144, %p145
      %p147 = scmp.ne.s32.totalorder %s136, %s139
      %p148 = scmp.eq.s32.totalorder %s21, 1
      %p149 = por %p147, %p148
      %p150 = scmp.ne.s32.totalorder %s139, %s140
      %p151 = scmp.eq.s32.totalorder %s21, 0
      %p152 = por %p150, %p151
      %p153 = scmp.ne.s32.totalorder %s139, %s140
      %p154 = scmp.eq.s32.totalorder %s22, 1
      %p155 = por %p153, %p154
      %p157 = scmp.ne.s32.totalorder %s140, %s156
      %p158 = scmp.eq.s32.totalorder %s22, 0
      %p159 = por %p157, %p158
      %p160 = scmp.le.s32.totalorder 1, %s16
      %p161 = scmp.lt.s32.totalorder %s16, 3
      %p162 = pnand %p160, %p161
      %p163 = pneg %p162
      // Predicated region
      $region9: #{tpu_custom_call.1} parent=5 // pred_check
        _
      $region10: #{tpu_custom_call.1} parent=5 // pred_check_branch
        %165 = sbr.rel (%p162) target = $region12
      $region11: #{tpu_custom_call.1} parent=5 // pred_region
        %s166 = ssub.s32 %s16, 1
        // Predicated region
        $region13: #{tpu_custom_call.1} parent=11 // pred_check
          %p167 = pneg %p63
        $region14: #{tpu_custom_call.1} parent=11 // pred_check_branch
          %169 = sbr.rel (%p167) target = $region16
        $region15: #{tpu_custom_call.1} parent=11 // pred_region
          %s171 = ssub.s32 16384, 16384
          %172 = vsyncadd [#allocation6], %s171
          %s173 = sshll.u32 [#allocation5], 4
          %s174 = int_to_ptr.vmem [resolvable:$true] %s173
          %179 = dma.hbm_to_vmem [thread:$0]  %s1, 16384, %s174, [#allocation6], 256, 256, 16
        $region16: #{tpu_custom_call.1} parent=11 // pred_fallthru
          _
        // Predicated region
        $region17: #{tpu_custom_call.1} parent=11 // pred_check
          %p180 = pneg %p84
        $region18: #{tpu_custom_call.1} parent=11 // pred_check_branch
          %182 = sbr.rel (%p180) target = $region20
        $region19: #{tpu_custom_call.1} parent=11 // pred_region
          _
        $region20: #{tpu_custom_call.1} parent=11 // pred_fallthru
          _
        // Predicated region
        $region21: #{tpu_custom_call.1} parent=11 // pred_check
          %p183 = pneg %p105
        $region22: #{tpu_custom_call.1} parent=11 // pred_check_branch
          %185 = sbr.rel (%p183) target = $region24
        $region23: #{tpu_custom_call.1} parent=11 // pred_region
          %s187 = ssub.s32 64, 64
          %188 = vsyncadd [#allocation6], %s187
          %s190 = sshll.u32 [#allocation7], 4
          %s191 = int_to_ptr.vmem [resolvable:$true] %s190
          %193 = dma.hbm_to_vmem [thread:$0]  %s3, 64, %s191, [#allocation6]
        $region24: #{tpu_custom_call.1} parent=11 // pred_fallthru
          _
        // Predicated region
        $region25: #{tpu_custom_call.1} parent=11 // pred_check
          %p194 = pneg %p126
        $region26: #{tpu_custom_call.1} parent=11 // pred_check_branch
          %196 = sbr.rel (%p194) target = $region28
        $region27: #{tpu_custom_call.1} parent=11 // pred_region
          _
        $region28: #{tpu_custom_call.1} parent=11 // pred_fallthru
          _
      $region12: #{tpu_custom_call.1} parent=5 // pred_fallthru
        _
      %p197 = scmp.lt.s32.totalorder %s16, 2
      // Predicated region
      $region29: #{tpu_custom_call.1} parent=5 // pred_check
        %p198 = pneg %p197
      $region30: #{tpu_custom_call.1} parent=5 // pred_check_branch
        %200 = sbr.rel (%p198) target = $region32
      $region31: #{tpu_custom_call.1} parent=5 // pred_region
        // Predicated region
        $region33: #{tpu_custom_call.1} parent=31 // pred_check
          %p201 = pneg %p36
        $region34: #{tpu_custom_call.1} parent=31 // pred_check_branch
          %203 = sbr.rel (%p201) target = $region36
        $region35: #{tpu_custom_call.1} parent=31 // pred_region
          %s204 = sand.u32 %s26, 1
          %s205 = scalar_lea.sflag [#allocation4], %s204
          %s206 = sand.u32 %s26, 1
          %s207 = smul.addr %s206, 64
          %s208 = scalar_lea.vmem [#allocation3], %s207
          %s209 = smul.u32 2, %s16
          %s210 = ssub.s32 3, %s209
          %p211 = scmp.lt.s32.totalorder %s210, 2
          %s212 = scalar_select %p211, %s210, 2
          %s213 = smul.u32 128, %s212
          %s214 = smul.u32 %s213, 4
          %s216 = ssub.s32 1024, %s214
          %217 = vsyncadd %s205, %s216
          %p218 = scmp.ne.s32.totalorder 0, %s214
          %s219 = smul.addr %s209, 4
          %s220 = smul.addr %s219, 128
          %s221 = scalar_lea.hbm %s0, %s220
          %s222 = smul.u32 32, %s212
          %s223 = sshll.u32 %s208, 4
          %s224 = int_to_ptr.vmem [resolvable:$true] %s223
          %s225 = sshll.u32 %s222, 4
          %229 = dma.hbm_to_vmem [thread:$0]  (%p218), %s221, %s225, %s224, %s205, 512, 512, 32
        $region36: #{tpu_custom_call.1} parent=31 // pred_fallthru
          _
      $region32: #{tpu_custom_call.1} parent=5 // pred_fallthru
        _
      %p230 = scmp.le.s32.totalorder 1, %s16
      %p231 = scmp.lt.s32.totalorder %s16, 3
      %p232 = pnand %p230, %p231
      %p233 = pneg %p232
      // Predicated region
      $region37: #{tpu_custom_call.1} parent=5 // pred_check
        _
      $region38: #{tpu_custom_call.1} parent=5 // pred_check_branch
        %235 = sbr.rel (%p232) target = $region40
      $region39: #{tpu_custom_call.1} parent=5 // pred_region
        %s236 = ssub.s32 %s16, 1
        %s237 = sand.u32 %s29, 1
        %s238 = scalar_lea.sflag [#allocation4], %s237
        %s239 = sand.u32 %s29, 1
        %s240 = smul.addr %s239, 64
        %s241 = scalar_lea.vmem [#allocation3], %s240
        // Predicated region
        $region41: #{tpu_custom_call.1} parent=39 // pred_check
          %p242 = pneg %p42
        $region42: #{tpu_custom_call.1} parent=39 // pred_check_branch
          %244 = sbr.rel (%p242) target = $region44
        $region43: #{tpu_custom_call.1} parent=39 // pred_region
          %245 = dma.done %s238, 1024
        $region44: #{tpu_custom_call.1} parent=39 // pred_fallthru
          _
        // Predicated region
        $region45: #{tpu_custom_call.1} parent=39 // pred_check
          %p246 = pneg %p63
        $region46: #{tpu_custom_call.1} parent=39 // pred_check_branch
          %248 = sbr.rel (%p246) target = $region48
        $region47: #{tpu_custom_call.1} parent=39 // pred_region
          %249 = dma.done [#allocation6], 16384
        $region48: #{tpu_custom_call.1} parent=39 // pred_fallthru
          _
        // Predicated region
        $region49: #{tpu_custom_call.1} parent=39 // pred_check
          %p250 = pneg %p105
        $region50: #{tpu_custom_call.1} parent=39 // pred_check_branch
          %252 = sbr.rel (%p250) target = $region52
        $region51: #{tpu_custom_call.1} parent=39 // pred_region
          %253 = dma.done [#allocation6], 64
        $region52: #{tpu_custom_call.1} parent=39 // pred_fallthru
          _
        %s254 = sand.u32 %s29, 1
        %s255 = scalar_lea.sflag [#allocation4], %s254
        %s256 = sand.u32 %s29, 1
        %s257 = smul.addr %s256, 64
        %s258 = scalar_lea.vmem [#allocation3], %s257
        %p259 = pneg %p42
        %p260 = pneg %p39
        %p261 = pneg %p63
        %p262 = pneg %p60
        %p263 = pneg %p84
        %p264 = pneg %p81
        %p265 = pneg %p105
        %p266 = pneg %p102
        %p267 = pneg %p126
        %p268 = pneg %p123
        %p269 = pneg %p152
        %p270 = pneg %p149
        %s271 = sand.u32 %s139, 1
        %s272 = sand.u32 %s139, 1
        %s273 = smul.addr %s272, 16
        %s274 = scalar_lea.vmem [#allocation8], %s273
        %s275 = smul.u32 2, %s21
        %s276 = ssub.s32 3, %s275
        %p277 = scmp.lt.s32.totalorder %s276, 2
        %s278 = scalar_select %p277, %s276, 2
        %s279 = smul.u32 128, %s278
        %s280 = smul.u32 %s279, 4
        %s281 = smul.u32 2, %s21
        %s282 = ssub.s32 3, %s281
        %p283 = scmp.lt.s32.totalorder %s282, 2
        %s284 = scalar_select %p283, %s282, 2
        %s285 = smul.u32 128, %s284
        %v286 = vld [vmem:[%s241] sm:$0xff]
        %v287 = vld [vmem:[%s241 + $0x8] sm:$0xff]
        %v288 = vld [vmem:[%s241 + $0x10] sm:$0xff]
        %v289 = vld [vmem:[%s241 + $0x18] sm:$0xff]
        %v290 = vld [vmem:[%s241 + $0x20] sm:$0xff]
        %v291 = vld [vmem:[%s241 + $0x28] sm:$0xff]
        %v292 = vld [vmem:[%s241 + $0x30] sm:$0xff]
        %v293 = vld [vmem:[%s241 + $0x38] sm:$0xff]
        %v294 = vpack.c.bf16 %v290, %v286
        %v295 = vpack.c.bf16 %v291, %v287
        %v296 = vpack.c.bf16 %v292, %v288
        %v297 = vpack.c.bf16 %v293, %v289
        %v298 = vld [vmem:[#allocation5] sm:$0xff]
        %v299 = vld [vmem:[#allocation5 + $0x8] sm:$0xff]
        %v300 = vld [vmem:[#allocation5 + $0x10] sm:$0xff]
        %v301 = vld [vmem:[#allocation5 + $0x18] sm:$0xff]
        %v302 = vld [vmem:[#allocation5 + $0x20] sm:$0xff]
        %v303 = vld [vmem:[#allocation5 + $0x28] sm:$0xff]
        %v304 = vld [vmem:[#allocation5 + $0x30] sm:$0xff]
        %v305 = vld [vmem:[#allocation5 + $0x38] sm:$0xff]
        %v306 = vld [vmem:[#allocation5 + $0x40] sm:$0xff]
        %v307 = vld [vmem:[#allocation5 + $0x48] sm:$0xff]
        %v308 = vld [vmem:[#allocation5 + $0x50] sm:$0xff]
        %v309 = vld [vmem:[#allocation5 + $0x58] sm:$0xff]
        %v310 = vld [vmem:[#allocation5 + $0x60] sm:$0xff]
        %v311 = vld [vmem:[#allocation5 + $0x68] sm:$0xff]
        %v312 = vld [vmem:[#allocation5 + $0x70] sm:$0xff]
        %v313 = vld [vmem:[#allocation5 + $0x78] sm:$0xff]
        %v314 = vld [vmem:[#allocation5 + $0x80] sm:$0xff]
        %v315 = vld [vmem:[#allocation5 + $0x88] sm:$0xff]
        %v316 = vld [vmem:[#allocation5 + $0x90] sm:$0xff]
        %v317 = vld [vmem:[#allocation5 + $0x98] sm:$0xff]
        %v318 = vld [vmem:[#allocation5 + $0xa0] sm:$0xff]
        %v319 = vld [vmem:[#allocation5 + $0xa8] sm:$0xff]
        %v320 = vld [vmem:[#allocation5 + $0xb0] sm:$0xff]
        %v321 = vld [vmem:[#allocation5 + $0xb8] sm:$0xff]
        %v322 = vld [vmem:[#allocation5 + $0xc0] sm:$0xff]
        %v323 = vld [vmem:[#allocation5 + $0xc8] sm:$0xff]
        %v324 = vld [vmem:[#allocation5 + $0xd0] sm:$0xff]
        %v325 = vld [vmem:[#allocation5 + $0xd8] sm:$0xff]
        %v326 = vld [vmem:[#allocation5 + $0xe0] sm:$0xff]
        %v327 = vld [vmem:[#allocation5 + $0xe8] sm:$0xff]
        %v328 = vld [vmem:[#allocation5 + $0xf0] sm:$0xff]
        %v329 = vld [vmem:[#allocation5 + $0xf8] sm:$0xff]
        %v330 = vld [vmem:[#allocation5 + $0x100] sm:$0xff]
        %v331 = vld [vmem:[#allocation5 + $0x108] sm:$0xff]
        %v332 = vld [vmem:[#allocation5 + $0x110] sm:$0xff]
        %v333 = vld [vmem:[#allocation5 + $0x118] sm:$0xff]
        %v334 = vld [vmem:[#allocation5 + $0x120] sm:$0xff]
        %v335 = vld [vmem:[#allocation5 + $0x128] sm:$0xff]
        %v336 = vld [vmem:[#allocation5 + $0x130] sm:$0xff]
        %v337 = vld [vmem:[#allocation5 + $0x138] sm:$0xff]
        %v338 = vld [vmem:[#allocation5 + $0x140] sm:$0xff]
        %v339 = vld [vmem:[#allocation5 + $0x148] sm:$0xff]
        %v340 = vld [vmem:[#allocation5 + $0x150] sm:$0xff]
        %v341 = vld [vmem:[#allocation5 + $0x158] sm:$0xff]
        %v342 = vld [vmem:[#allocation5 + $0x160] sm:$0xff]
        %v343 = vld [vmem:[#allocation5 + $0x168] sm:$0xff]
        %v344 = vld [vmem:[#allocation5 + $0x170] sm:$0xff]
        %v345 = vld [vmem:[#allocation5 + $0x178] sm:$0xff]
        %v346 = vld [vmem:[#allocation5 + $0x180] sm:$0xff]
        %v347 = vld [vmem:[#allocation5 + $0x188] sm:$0xff]
        %v348 = vld [vmem:[#allocation5 + $0x190] sm:$0xff]
        %v349 = vld [vmem:[#allocation5 + $0x198] sm:$0xff]
        %v350 = vld [vmem:[#allocation5 + $0x1a0] sm:$0xff]
        %v351 = vld [vmem:[#allocation5 + $0x1a8] sm:$0xff]
        %v352 = vld [vmem:[#allocation5 + $0x1b0] sm:$0xff]
        %v353 = vld [vmem:[#allocation5 + $0x1b8] sm:$0xff]
        %v354 = vld [vmem:[#allocation5 + $0x1c0] sm:$0xff]
        %v355 = vld [vmem:[#allocation5 + $0x1c8] sm:$0xff]
        %v356 = vld [vmem:[#allocation5 + $0x1d0] sm:$0xff]
        %v357 = vld [vmem:[#allocation5 + $0x1d8] sm:$0xff]
        %v358 = vld [vmem:[#allocation5 + $0x1e0] sm:$0xff]
        %v359 = vld [vmem:[#allocation5 + $0x1e8] sm:$0xff]
        %v360 = vld [vmem:[#allocation5 + $0x1f0] sm:$0xff]
        %v361 = vld [vmem:[#allocation5 + $0x1f8] sm:$0xff]
        %v362 = vld [vmem:[#allocation5 + $0x200] sm:$0xff]
        %v363 = vld [vmem:[#allocation5 + $0x208] sm:$0xff]
        %v364 = vld [vmem:[#allocation5 + $0x210] sm:$0xff]
        %v365 = vld [vmem:[#allocation5 + $0x218] sm:$0xff]
        %v366 = vld [vmem:[#allocation5 + $0x220] sm:$0xff]
        %v367 = vld [vmem:[#allocation5 + $0x228] sm:$0xff]
        %v368 = vld [vmem:[#allocation5 + $0x230] sm:$0xff]
        %v369 = vld [vmem:[#allocation5 + $0x238] sm:$0xff]
        %v370 = vld [vmem:[#allocation5 + $0x240] sm:$0xff]
        %v371 = vld [vmem:[#allocation5 + $0x248] sm:$0xff]
        %v372 = vld [vmem:[#allocation5 + $0x250] sm:$0xff]
        %v373 = vld [vmem:[#allocation5 + $0x258] sm:$0xff]
        %v374 = vld [vmem:[#allocation5 + $0x260] sm:$0xff]
        %v375 = vld [vmem:[#allocation5 + $0x268] sm:$0xff]
        %v376 = vld [vmem:[#allocation5 + $0x270] sm:$0xff]
        %v377 = vld [vmem:[#allocation5 + $0x278] sm:$0xff]
        %v378 = vld [vmem:[#allocation5 + $0x280] sm:$0xff]
        %v379 = vld [vmem:[#allocation5 + $0x288] sm:$0xff]
        %v380 = vld [vmem:[#allocation5 + $0x290] sm:$0xff]
        %v381 = vld [vmem:[#allocation5 + $0x298] sm:$0xff]
        %v382 = vld [vmem:[#allocation5 + $0x2a0] sm:$0xff]
        %v383 = vld [vmem:[#allocation5 + $0x2a8] sm:$0xff]
        %v384 = vld [vmem:[#allocation5 + $0x2b0] sm:$0xff]
        %v385 = vld [vmem:[#allocation5 + $0x2b8] sm:$0xff]
        %v386 = vld [vmem:[#allocation5 + $0x2c0] sm:$0xff]
        %v387 = vld [vmem:[#allocation5 + $0x2c8] sm:$0xff]
        %v388 = vld [vmem:[#allocation5 + $0x2d0] sm:$0xff]
        %v389 = vld [vmem:[#allocation5 + $0x2d8] sm:$0xff]
        %v390 = vld [vmem:[#allocation5 + $0x2e0] sm:$0xff]
        %v391 = vld [vmem:[#allocation5 + $0x2e8] sm:$0xff]
        %v392 = vld [vmem:[#allocation5 + $0x2f0] sm:$0xff]
        %v393 = vld [vmem:[#allocation5 + $0x2f8] sm:$0xff]
        %v394 = vld [vmem:[#allocation5 + $0x300] sm:$0xff]
        %v395 = vld [vmem:[#allocation5 + $0x308] sm:$0xff]
        %v396 = vld [vmem:[#allocation5 + $0x310] sm:$0xff]
        %v397 = vld [vmem:[#allocation5 + $0x318] sm:$0xff]
        %v398 = vld [vmem:[#allocation5 + $0x320] sm:$0xff]
        %v399 = vld [vmem:[#allocation5 + $0x328] sm:$0xff]
        %v400 = vld [vmem:[#allocation5 + $0x330] sm:$0xff]
        %v401 = vld [vmem:[#allocation5 + $0x338] sm:$0xff]
        %v402 = vld [vmem:[#allocation5 + $0x340] sm:$0xff]
        %v403 = vld [vmem:[#allocation5 + $0x348] sm:$0xff]
        %v404 = vld [vmem:[#allocation5 + $0x350] sm:$0xff]
        %v405 = vld [vmem:[#allocation5 + $0x358] sm:$0xff]
        %v406 = vld [vmem:[#allocation5 + $0x360] sm:$0xff]
        %v407 = vld [vmem:[#allocation5 + $0x368] sm:$0xff]
        %v408 = vld [vmem:[#allocation5 + $0x370] sm:$0xff]
        %v409 = vld [vmem:[#allocation5 + $0x378] sm:$0xff]
        %v410 = vld [vmem:[#allocation5 + $0x380] sm:$0xff]
        %v411 = vld [vmem:[#allocation5 + $0x388] sm:$0xff]
        %v412 = vld [vmem:[#allocation5 + $0x390] sm:$0xff]
        %v413 = vld [vmem:[#allocation5 + $0x398] sm:$0xff]
        %v414 = vld [vmem:[#allocation5 + $0x3a0] sm:$0xff]
        %v415 = vld [vmem:[#allocation5 + $0x3a8] sm:$0xff]
        %v416 = vld [vmem:[#allocation5 + $0x3b0] sm:$0xff]
        %v417 = vld [vmem:[#allocation5 + $0x3b8] sm:$0xff]
        %v418 = vld [vmem:[#allocation5 + $0x3c0] sm:$0xff]
        %v419 = vld [vmem:[#allocation5 + $0x3c8] sm:$0xff]
        %v420 = vld [vmem:[#allocation5 + $0x3d0] sm:$0xff]
        %v421 = vld [vmem:[#allocation5 + $0x3d8] sm:$0xff]
        %v422 = vld [vmem:[#allocation5 + $0x3e0] sm:$0xff]
        %v423 = vld [vmem:[#allocation5 + $0x3e8] sm:$0xff]
        %v424 = vld [vmem:[#allocation5 + $0x3f0] sm:$0xff]
        %v425 = vld [vmem:[#allocation5 + $0x3f8] sm:$0xff]
        %v426 = vld [vmem:[%s2] sm:$0xf]
        %v428 = vlaneseq
        %v429 = vshrl.u32 %v428, 7
        %v430 = vsub.s32 0, %v429
        %v431 = vrot.slane %v426, %v430
        %v432 = vlaneseq
        %v433 = vshrl.u32 %v432, 7
        %v434 = vsub.s32 1, %v433
        %v435 = vrot.slane %v426, %v434
        %v436 = vlaneseq
        %v437 = vshrl.u32 %v436, 7
        %v438 = vsub.s32 2, %v437
        %v439 = vrot.slane %v426, %v438
        %v440 = vlaneseq
        %v441 = vshrl.u32 %v440, 7
        %v442 = vsub.s32 3, %v441
        %v443 = vrot.slane %v426, %v442
        %v576 = vunpack.c.l.b16 %v298
        %v577 = vunpack.c.h.b16 %v298
        %v578 = vunpack.c.l.b16 %v299
        %v579 = vunpack.c.h.b16 %v299
        %v580 = vunpack.c.l.b16 %v300
        %v581 = vunpack.c.h.b16 %v300
        %v582 = vunpack.c.l.b16 %v301
        %v583 = vunpack.c.h.b16 %v301
        %v584 = vunpack.c.l.b16 %v302
        %v585 = vunpack.c.h.b16 %v302
        %v586 = vunpack.c.l.b16 %v303
        %v587 = vunpack.c.h.b16 %v303
        %v588 = vunpack.c.l.b16 %v304
        %v589 = vunpack.c.h.b16 %v304
        %v590 = vunpack.c.l.b16 %v305
        %v591 = vunpack.c.h.b16 %v305
        %v592 = vunpack.c.l.b16 %v306
        %v593 = vunpack.c.h.b16 %v306
        %v594 = vunpack.c.l.b16 %v307
        %v595 = vunpack.c.h.b16 %v307
        %v596 = vunpack.c.l.b16 %v308
        %v597 = vunpack.c.h.b16 %v308
        %v598 = vunpack.c.l.b16 %v309
        %v599 = vunpack.c.h.b16 %v309
        %v600 = vunpack.c.l.b16 %v310
        %v601 = vunpack.c.h.b16 %v310
        %v602 = vunpack.c.l.b16 %v311
        %v603 = vunpack.c.h.b16 %v311
        %v604 = vunpack.c.l.b16 %v312
        %v605 = vunpack.c.h.b16 %v312
        %v606 = vunpack.c.l.b16 %v313
        %v607 = vunpack.c.h.b16 %v313
        %v608 = vunpack.c.l.b16 %v314
        %v609 = vunpack.c.h.b16 %v314
        %v610 = vunpack.c.l.b16 %v315
        %v611 = vunpack.c.h.b16 %v315
        %v612 = vunpack.c.l.b16 %v316
        %v613 = vunpack.c.h.b16 %v316
        %v614 = vunpack.c.l.b16 %v317
        %v615 = vunpack.c.h.b16 %v317
        %v616 = vunpack.c.l.b16 %v318
        %v617 = vunpack.c.h.b16 %v318
        %v618 = vunpack.c.l.b16 %v319
        %v619 = vunpack.c.h.b16 %v319
        %v620 = vunpack.c.l.b16 %v320
        %v621 = vunpack.c.h.b16 %v320
        %v622 = vunpack.c.l.b16 %v321
        %v623 = vunpack.c.h.b16 %v321
        %v624 = vunpack.c.l.b16 %v322
        %v625 = vunpack.c.h.b16 %v322
        %v626 = vunpack.c.l.b16 %v323
        %v627 = vunpack.c.h.b16 %v323
        %v628 = vunpack.c.l.b16 %v324
        %v629 = vunpack.c.h.b16 %v324
        %v630 = vunpack.c.l.b16 %v325
        %v631 = vunpack.c.h.b16 %v325
        %v632 = vunpack.c.l.b16 %v326
        %v633 = vunpack.c.h.b16 %v326
        %v634 = vunpack.c.l.b16 %v327
        %v635 = vunpack.c.h.b16 %v327
        %v636 = vunpack.c.l.b16 %v328
        %v637 = vunpack.c.h.b16 %v328
        %v638 = vunpack.c.l.b16 %v329
        %v639 = vunpack.c.h.b16 %v329
        %v640 = vunpack.c.l.b16 %v330
        %v641 = vunpack.c.h.b16 %v330
        %v642 = vunpack.c.l.b16 %v331
        %v643 = vunpack.c.h.b16 %v331
        %v644 = vunpack.c.l.b16 %v332
        %v645 = vunpack.c.h.b16 %v332
        %v646 = vunpack.c.l.b16 %v333
        %v647 = vunpack.c.h.b16 %v333
        %v648 = vunpack.c.l.b16 %v334
        %v649 = vunpack.c.h.b16 %v334
        %v650 = vunpack.c.l.b16 %v335
        %v651 = vunpack.c.h.b16 %v335
        %v652 = vunpack.c.l.b16 %v336
        %v653 = vunpack.c.h.b16 %v336
        %v654 = vunpack.c.l.b16 %v337
        %v655 = vunpack.c.h.b16 %v337
        %v656 = vunpack.c.l.b16 %v338
        %v657 = vunpack.c.h.b16 %v338
        %v658 = vunpack.c.l.b16 %v339
        %v659 = vunpack.c.h.b16 %v339
        %v660 = vunpack.c.l.b16 %v340
        %v661 = vunpack.c.h.b16 %v340
        %v662 = vunpack.c.l.b16 %v341
        %v663 = vunpack.c.h.b16 %v341
        %v664 = vunpack.c.l.b16 %v342
        %v665 = vunpack.c.h.b16 %v342
        %v666 = vunpack.c.l.b16 %v343
        %v667 = vunpack.c.h.b16 %v343
        %v668 = vunpack.c.l.b16 %v344
        %v669 = vunpack.c.h.b16 %v344
        %v670 = vunpack.c.l.b16 %v345
        %v671 = vunpack.c.h.b16 %v345
        %v672 = vunpack.c.l.b16 %v346
        %v673 = vunpack.c.h.b16 %v346
        %v674 = vunpack.c.l.b16 %v347
        %v675 = vunpack.c.h.b16 %v347
        %v676 = vunpack.c.l.b16 %v348
        %v677 = vunpack.c.h.b16 %v348
        %v678 = vunpack.c.l.b16 %v349
        %v679 = vunpack.c.h.b16 %v349
        %v680 = vunpack.c.l.b16 %v350
        %v681 = vunpack.c.h.b16 %v350
        %v682 = vunpack.c.l.b16 %v351
        %v683 = vunpack.c.h.b16 %v351
        %v684 = vunpack.c.l.b16 %v352
        %v685 = vunpack.c.h.b16 %v352
        %v686 = vunpack.c.l.b16 %v353
        %v687 = vunpack.c.h.b16 %v353
        %v688 = vunpack.c.l.b16 %v354
        %v689 = vunpack.c.h.b16 %v354
        %v690 = vunpack.c.l.b16 %v355
        %v691 = vunpack.c.h.b16 %v355
        %v692 = vunpack.c.l.b16 %v356
        %v693 = vunpack.c.h.b16 %v356
        %v694 = vunpack.c.l.b16 %v357
        %v695 = vunpack.c.h.b16 %v357
        %v696 = vunpack.c.l.b16 %v358
        %v697 = vunpack.c.h.b16 %v358
        %v698 = vunpack.c.l.b16 %v359
        %v699 = vunpack.c.h.b16 %v359
        %v700 = vunpack.c.l.b16 %v360
        %v701 = vunpack.c.h.b16 %v360
        %v702 = vunpack.c.l.b16 %v361
        %v703 = vunpack.c.h.b16 %v361
        %v704 = vunpack.c.l.b16 %v362
        %v705 = vunpack.c.h.b16 %v362
        %v706 = vunpack.c.l.b16 %v363
        %v707 = vunpack.c.h.b16 %v363
        %v708 = vunpack.c.l.b16 %v364
        %v709 = vunpack.c.h.b16 %v364
        %v710 = vunpack.c.l.b16 %v365
        %v711 = vunpack.c.h.b16 %v365
        %v712 = vunpack.c.l.b16 %v366
        %v713 = vunpack.c.h.b16 %v366
        %v714 = vunpack.c.l.b16 %v367
        %v715 = vunpack.c.h.b16 %v367
        %v716 = vunpack.c.l.b16 %v368
        %v717 = vunpack.c.h.b16 %v368
        %v718 = vunpack.c.l.b16 %v369
        %v719 = vunpack.c.h.b16 %v369
        %v720 = vunpack.c.l.b16 %v370
        %v721 = vunpack.c.h.b16 %v370
        %v722 = vunpack.c.l.b16 %v371
        %v723 = vunpack.c.h.b16 %v371
        %v724 = vunpack.c.l.b16 %v372
        %v725 = vunpack.c.h.b16 %v372
        %v726 = vunpack.c.l.b16 %v373
        %v727 = vunpack.c.h.b16 %v373
        %v728 = vunpack.c.l.b16 %v374
        %v729 = vunpack.c.h.b16 %v374
        %v730 = vunpack.c.l.b16 %v375
        %v731 = vunpack.c.h.b16 %v375
        %v732 = vunpack.c.l.b16 %v376
        %v733 = vunpack.c.h.b16 %v376
        %v734 = vunpack.c.l.b16 %v377
        %v735 = vunpack.c.h.b16 %v377
        %v736 = vunpack.c.l.b16 %v378
        %v737 = vunpack.c.h.b16 %v378
        %v738 = vunpack.c.l.b16 %v379
        %v739 = vunpack.c.h.b16 %v379
        %v740 = vunpack.c.l.b16 %v380
        %v741 = vunpack.c.h.b16 %v380
        %v742 = vunpack.c.l.b16 %v381
        %v743 = vunpack.c.h.b16 %v381
        %v744 = vunpack.c.l.b16 %v382
        %v745 = vunpack.c.h.b16 %v382
        %v746 = vunpack.c.l.b16 %v383
        %v747 = vunpack.c.h.b16 %v383
        %v748 = vunpack.c.l.b16 %v384
        %v749 = vunpack.c.h.b16 %v384
        %v750 = vunpack.c.l.b16 %v385
        %v751 = vunpack.c.h.b16 %v385
        %v752 = vunpack.c.l.b16 %v386
        %v753 = vunpack.c.h.b16 %v386
        %v754 = vunpack.c.l.b16 %v387
        %v755 = vunpack.c.h.b16 %v387
        %v756 = vunpack.c.l.b16 %v388
        %v757 = vunpack.c.h.b16 %v388
        %v758 = vunpack.c.l.b16 %v389
        %v759 = vunpack.c.h.b16 %v389
        %v760 = vunpack.c.l.b16 %v390
        %v761 = vunpack.c.h.b16 %v390
        %v762 = vunpack.c.l.b16 %v391
        %v763 = vunpack.c.h.b16 %v391
        %v764 = vunpack.c.l.b16 %v392
        %v765 = vunpack.c.h.b16 %v392
        %v766 = vunpack.c.l.b16 %v393
        %v767 = vunpack.c.h.b16 %v393
        %v768 = vunpack.c.l.b16 %v394
        %v769 = vunpack.c.h.b16 %v394
        %v770 = vunpack.c.l.b16 %v395
        %v771 = vunpack.c.h.b16 %v395
        %v772 = vunpack.c.l.b16 %v396
        %v773 = vunpack.c.h.b16 %v396
        %v774 = vunpack.c.l.b16 %v397
        %v775 = vunpack.c.h.b16 %v397
        %v776 = vunpack.c.l.b16 %v398
        %v777 = vunpack.c.h.b16 %v398
        %v778 = vunpack.c.l.b16 %v399
        %v779 = vunpack.c.h.b16 %v399
        %v780 = vunpack.c.l.b16 %v400
        %v781 = vunpack.c.h.b16 %v400
        %v782 = vunpack.c.l.b16 %v401
        %v783 = vunpack.c.h.b16 %v401
        %v784 = vunpack.c.l.b16 %v402
        %v785 = vunpack.c.h.b16 %v402
        %v786 = vunpack.c.l.b16 %v403
        %v787 = vunpack.c.h.b16 %v403
        %v788 = vunpack.c.l.b16 %v404
        %v789 = vunpack.c.h.b16 %v404
        %v790 = vunpack.c.l.b16 %v405
        %v791 = vunpack.c.h.b16 %v405
        %v792 = vunpack.c.l.b16 %v406
        %v793 = vunpack.c.h.b16 %v406
        %v794 = vunpack.c.l.b16 %v407
        %v795 = vunpack.c.h.b16 %v407
        %v796 = vunpack.c.l.b16 %v408
        %v797 = vunpack.c.h.b16 %v408
        %v798 = vunpack.c.l.b16 %v409
        %v799 = vunpack.c.h.b16 %v409
        %v800 = vunpack.c.l.b16 %v410
        %v801 = vunpack.c.h.b16 %v410
        %v802 = vunpack.c.l.b16 %v411
        %v803 = vunpack.c.h.b16 %v411
        %v804 = vunpack.c.l.b16 %v412
        %v805 = vunpack.c.h.b16 %v412
        %v806 = vunpack.c.l.b16 %v413
        %v807 = vunpack.c.h.b16 %v413
        %v808 = vunpack.c.l.b16 %v414
        %v809 = vunpack.c.h.b16 %v414
        %v810 = vunpack.c.l.b16 %v415
        %v811 = vunpack.c.h.b16 %v415
        %v812 = vunpack.c.l.b16 %v416
        %v813 = vunpack.c.h.b16 %v416
        %v814 = vunpack.c.l.b16 %v417
        %v815 = vunpack.c.h.b16 %v417
        %v816 = vunpack.c.l.b16 %v418
        %v817 = vunpack.c.h.b16 %v418
        %v818 = vunpack.c.l.b16 %v419
        %v819 = vunpack.c.h.b16 %v419
        %v820 = vunpack.c.l.b16 %v420
        %v821 = vunpack.c.h.b16 %v420
        %v822 = vunpack.c.l.b16 %v421
        %v823 = vunpack.c.h.b16 %v421
        %v824 = vunpack.c.l.b16 %v422
        %v825 = vunpack.c.h.b16 %v422
        %v826 = vunpack.c.l.b16 %v423
        %v827 = vunpack.c.h.b16 %v423
        %v828 = vunpack.c.l.b16 %v424
        %v829 = vunpack.c.h.b16 %v424
        %v830 = vunpack.c.l.b16 %v425
        %v831 = vunpack.c.h.b16 %v425
        %v832 = vpack.c.b16 %v580, %v576
        %v833 = vpack.c.b16 %v581, %v577
        %v834 = vpack.c.b16 %v582, %v578
        %v835 = vpack.c.b16 %v583, %v579
        %v836 = vpack.c.b16 %v588, %v584
        %v837 = vpack.c.b16 %v589, %v585
        %v838 = vpack.c.b16 %v590, %v586
        %v839 = vpack.c.b16 %v591, %v587
        %v840 = vpack.c.b16 %v596, %v592
        %v841 = vpack.c.b16 %v597, %v593
        %v842 = vpack.c.b16 %v598, %v594
        %v843 = vpack.c.b16 %v599, %v595
        %v844 = vpack.c.b16 %v604, %v600
        %v845 = vpack.c.b16 %v605, %v601
        %v846 = vpack.c.b16 %v606, %v602
        %v847 = vpack.c.b16 %v607, %v603
        %v848 = vpack.c.b16 %v612, %v608
        %v849 = vpack.c.b16 %v613, %v609
        %v850 = vpack.c.b16 %v614, %v610
        %v851 = vpack.c.b16 %v615, %v611
        %v852 = vpack.c.b16 %v620, %v616
        %v853 = vpack.c.b16 %v621, %v617
        %v854 = vpack.c.b16 %v622, %v618
        %v855 = vpack.c.b16 %v623, %v619
        %v856 = vpack.c.b16 %v628, %v624
        %v857 = vpack.c.b16 %v629, %v625
        %v858 = vpack.c.b16 %v630, %v626
        %v859 = vpack.c.b16 %v631, %v627
        %v860 = vpack.c.b16 %v636, %v632
        %v861 = vpack.c.b16 %v637, %v633
        %v862 = vpack.c.b16 %v638, %v634
        %v863 = vpack.c.b16 %v639, %v635
        %v864 = vpack.c.b16 %v644, %v640
        %v865 = vpack.c.b16 %v645, %v641
        %v866 = vpack.c.b16 %v646, %v642
        %v867 = vpack.c.b16 %v647, %v643
        %v868 = vpack.c.b16 %v652, %v648
        %v869 = vpack.c.b16 %v653, %v649
        %v870 = vpack.c.b16 %v654, %v650
        %v871 = vpack.c.b16 %v655, %v651
        %v872 = vpack.c.b16 %v660, %v656
        %v873 = vpack.c.b16 %v661, %v657
        %v874 = vpack.c.b16 %v662, %v658
        %v875 = vpack.c.b16 %v663, %v659
        %v876 = vpack.c.b16 %v668, %v664
        %v877 = vpack.c.b16 %v669, %v665
        %v878 = vpack.c.b16 %v670, %v666
        %v879 = vpack.c.b16 %v671, %v667
        %v880 = vpack.c.b16 %v676, %v672
        %v881 = vpack.c.b16 %v677, %v673
        %v882 = vpack.c.b16 %v678, %v674
        %v883 = vpack.c.b16 %v679, %v675
        %v884 = vpack.c.b16 %v684, %v680
        %v885 = vpack.c.b16 %v685, %v681
        %v886 = vpack.c.b16 %v686, %v682
        %v887 = vpack.c.b16 %v687, %v683
        %v888 = vpack.c.b16 %v692, %v688
        %v889 = vpack.c.b16 %v693, %v689
        %v890 = vpack.c.b16 %v694, %v690
        %v891 = vpack.c.b16 %v695, %v691
        %v892 = vpack.c.b16 %v700, %v696
        %v893 = vpack.c.b16 %v701, %v697
        %v894 = vpack.c.b16 %v702, %v698
        %v895 = vpack.c.b16 %v703, %v699
        %v896 = vpack.c.b16 %v708, %v704
        %v897 = vpack.c.b16 %v709, %v705
        %v898 = vpack.c.b16 %v710, %v706
        %v899 = vpack.c.b16 %v711, %v707
        %v900 = vpack.c.b16 %v716, %v712
        %v901 = vpack.c.b16 %v717, %v713
        %v902 = vpack.c.b16 %v718, %v714
        %v903 = vpack.c.b16 %v719, %v715
        %v904 = vpack.c.b16 %v724, %v720
        %v905 = vpack.c.b16 %v725, %v721
        %v906 = vpack.c.b16 %v726, %v722
        %v907 = vpack.c.b16 %v727, %v723
        %v908 = vpack.c.b16 %v732, %v728
        %v909 = vpack.c.b16 %v733, %v729
        %v910 = vpack.c.b16 %v734, %v730
        %v911 = vpack.c.b16 %v735, %v731
        %v912 = vpack.c.b16 %v740, %v736
        %v913 = vpack.c.b16 %v741, %v737
        %v914 = vpack.c.b16 %v742, %v738
        %v915 = vpack.c.b16 %v743, %v739
        %v916 = vpack.c.b16 %v748, %v744
        %v917 = vpack.c.b16 %v749, %v745
        %v918 = vpack.c.b16 %v750, %v746
        %v919 = vpack.c.b16 %v751, %v747
        %v920 = vpack.c.b16 %v756, %v752
        %v921 = vpack.c.b16 %v757, %v753
        %v922 = vpack.c.b16 %v758, %v754
        %v923 = vpack.c.b16 %v759, %v755
        %v924 = vpack.c.b16 %v764, %v760
        %v925 = vpack.c.b16 %v765, %v761
        %v926 = vpack.c.b16 %v766, %v762
        %v927 = vpack.c.b16 %v767, %v763
        %v928 = vpack.c.b16 %v772, %v768
        %v929 = vpack.c.b16 %v773, %v769
        %v930 = vpack.c.b16 %v774, %v770
        %v931 = vpack.c.b16 %v775, %v771
        %v932 = vpack.c.b16 %v780, %v776
        %v933 = vpack.c.b16 %v781, %v777
        %v934 = vpack.c.b16 %v782, %v778
        %v935 = vpack.c.b16 %v783, %v779
        %v936 = vpack.c.b16 %v788, %v784
        %v937 = vpack.c.b16 %v789, %v785
        %v938 = vpack.c.b16 %v790, %v786
        %v939 = vpack.c.b16 %v791, %v787
        %v940 = vpack.c.b16 %v796, %v792
        %v941 = vpack.c.b16 %v797, %v793
        %v942 = vpack.c.b16 %v798, %v794
        %v943 = vpack.c.b16 %v799, %v795
        %v944 = vpack.c.b16 %v804, %v800
        %v945 = vpack.c.b16 %v805, %v801
        %v946 = vpack.c.b16 %v806, %v802
        %v947 = vpack.c.b16 %v807, %v803
        %v948 = vpack.c.b16 %v812, %v808
        %v949 = vpack.c.b16 %v813, %v809
        %v950 = vpack.c.b16 %v814, %v810
        %v951 = vpack.c.b16 %v815, %v811
        %v952 = vpack.c.b16 %v820, %v816
        %v953 = vpack.c.b16 %v821, %v817
        %v954 = vpack.c.b16 %v822, %v818
        %v955 = vpack.c.b16 %v823, %v819
        %v956 = vpack.c.b16 %v828, %v824
        %v957 = vpack.c.b16 %v829, %v825
        %v958 = vpack.c.b16 %v830, %v826
        %v959 = vpack.c.b16 %v831, %v827
        %1088 = vmatprep.subr.bf16.mxu0 %v861
        %1089 = vmatpush1.bf16.msra.mxu0 %v860
        %1090 = vmatprep.subr.bf16.mxu0 %v857
        %1091 = vmatpush1.bf16.msra.mxu0 %v856
        %1092 = vmatprep.subr.bf16.mxu0 %v853
        %1093 = vmatpush1.bf16.msra.mxu0 %v852
        %1094 = vmatprep.subr.bf16.mxu0 %v849
        %1095 = vmatpush1.bf16.msra.mxu0 %v848
        %1096 = vmatprep.subr.bf16.mxu0 %v845
        %1097 = vmatpush1.bf16.msra.mxu0 %v844
        %1098 = vmatprep.subr.bf16.mxu0 %v841
        %1099 = vmatpush1.bf16.msra.mxu0 %v840
        %1100 = vmatprep.subr.bf16.mxu0 %v837
        %1101 = vmatpush1.bf16.msra.mxu0 %v836
        %1102 = vmatprep.subr.bf16.mxu0 %v833
        %1103 = vmatpush1.bf16.msra.mxu0 %v832
        %1104 = vmatprep.subr.bf16.mxu0 %v893
        %1105 = vmatpush2.bf16.msra.mxu0 %v892
        %1106 = vmatprep.subr.bf16.mxu0 %v889
        %1107 = vmatpush2.bf16.msra.mxu0 %v888
        %1108 = vmatprep.subr.bf16.mxu0 %v885
        %1109 = vmatpush2.bf16.msra.mxu0 %v884
        %1110 = vmatprep.subr.bf16.mxu0 %v881
        %1111 = vmatpush2.bf16.msra.mxu0 %v880
        %1112 = vmatprep.subr.bf16.mxu0 %v877
        %1113 = vmatpush2.bf16.msra.mxu0 %v876
        %1114 = vmatprep.subr.bf16.mxu0 %v873
        %1115 = vmatpush2.bf16.msra.mxu0 %v872
        %1116 = vmatprep.subr.bf16.mxu0 %v869
        %1117 = vmatpush2.bf16.msra.mxu0 %v868
        %1118 = vmatprep.subr.bf16.mxu0 %v865
        %1119 = vmatpush2.bf16.msra.mxu0 %v864
        %1120 = vmatprep.mubr.bf16.mxu0 %v295
        %1121 = vmatmul.mubr.bf16.gmra.mxu0 %v294
        %v1122 = vpop.f32.mrf.mxu0
        %v1123 = vadd.f32 %v431, %v1122
        %v1124 = vpop.f32.mrf.mxu0
        %v1125 = vadd.f32 %v435, %v1124
        %v1126 = vpop.f32.mrf.mxu0
        %v1127 = vadd.f32 %v431, %v1126
        %v1128 = vpop.f32.mrf.mxu0
        %v1129 = vadd.f32 %v435, %v1128
        %1130 = vdwg.mxu0
        %1131 = vmatprep.subr.bf16.mxu0 %v925
        %1132 = vmatpush1.bf16.msra.mxu0 %v924
        %1133 = vmatprep.subr.bf16.mxu0 %v921
        %1134 = vmatpush1.bf16.msra.mxu0 %v920
        %1135 = vmatprep.subr.bf16.mxu0 %v917
        %1136 = vmatpush1.bf16.msra.mxu0 %v916
        %1137 = vmatprep.subr.bf16.mxu0 %v913
        %1138 = vmatpush1.bf16.msra.mxu0 %v912
        %1139 = vmatprep.subr.bf16.mxu0 %v909
        %1140 = vmatpush1.bf16.msra.mxu0 %v908
        %1141 = vmatprep.subr.bf16.mxu0 %v905
        %1142 = vmatpush1.bf16.msra.mxu0 %v904
        %1143 = vmatprep.subr.bf16.mxu0 %v901
        %1144 = vmatpush1.bf16.msra.mxu0 %v900
        %1145 = vmatprep.subr.bf16.mxu0 %v897
        %1146 = vmatpush1.bf16.msra.mxu0 %v896
        %1147 = vmatprep.subr.bf16.mxu0 %v957
        %1148 = vmatpush2.bf16.msra.mxu0 %v956
        %1149 = vmatprep.subr.bf16.mxu0 %v953
        %1150 = vmatpush2.bf16.msra.mxu0 %v952
        %1151 = vmatprep.subr.bf16.mxu0 %v949
        %1152 = vmatpush2.bf16.msra.mxu0 %v948
        %1153 = vmatprep.subr.bf16.mxu0 %v945
        %1154 = vmatpush2.bf16.msra.mxu0 %v944
        %1155 = vmatprep.subr.bf16.mxu0 %v941
        %1156 = vmatpush2.bf16.msra.mxu0 %v940
        %1157 = vmatprep.subr.bf16.mxu0 %v937
        %1158 = vmatpush2.bf16.msra.mxu0 %v936
        %1159 = vmatprep.subr.bf16.mxu0 %v933
        %1160 = vmatpush2.bf16.msra.mxu0 %v932
        %1161 = vmatprep.subr.bf16.mxu0 %v929
        %1162 = vmatpush2.bf16.msra.mxu0 %v928
        %1163 = vmatprep.mubr.bf16.mxu0 %v297
        %1164 = vmatmul.mubr.bf16.gmra.mxu0 %v296
        %v1165 = vpop.f32.mrf.mxu0
        %v1166 = vadd.f32 %v1123, %v1165
        %v1167 = vpop.f32.mrf.mxu0
        %v1168 = vadd.f32 %v1125, %v1167
        %v1169 = vpop.f32.mrf.mxu0
        %v1170 = vadd.f32 %v1127, %v1169
        %v1171 = vpop.f32.mrf.mxu0
        %v1172 = vadd.f32 %v1129, %v1171
        %1173 = vdwg.mxu0
        %1174 = vmatprep.subr.bf16.mxu0 %v863
        %1175 = vmatpush1.bf16.msra.mxu0 %v862
        %1176 = vmatprep.subr.bf16.mxu0 %v859
        %1177 = vmatpush1.bf16.msra.mxu0 %v858
        %1178 = vmatprep.subr.bf16.mxu0 %v855
        %1179 = vmatpush1.bf16.msra.mxu0 %v854
        %1180 = vmatprep.subr.bf16.mxu0 %v851
        %1181 = vmatpush1.bf16.msra.mxu0 %v850
        %1182 = vmatprep.subr.bf16.mxu0 %v847
        %1183 = vmatpush1.bf16.msra.mxu0 %v846
        %1184 = vmatprep.subr.bf16.mxu0 %v843
        %1185 = vmatpush1.bf16.msra.mxu0 %v842
        %1186 = vmatprep.subr.bf16.mxu0 %v839
        %1187 = vmatpush1.bf16.msra.mxu0 %v838
        %1188 = vmatprep.subr.bf16.mxu0 %v835
        %1189 = vmatpush1.bf16.msra.mxu0 %v834
        %1190 = vmatprep.subr.bf16.mxu0 %v895
        %1191 = vmatpush2.bf16.msra.mxu0 %v894
        %1192 = vmatprep.subr.bf16.mxu0 %v891
        %1193 = vmatpush2.bf16.msra.mxu0 %v890
        %1194 = vmatprep.subr.bf16.mxu0 %v887
        %1195 = vmatpush2.bf16.msra.mxu0 %v886
        %1196 = vmatprep.subr.bf16.mxu0 %v883
        %1197 = vmatpush2.bf16.msra.mxu0 %v882
        %1198 = vmatprep.subr.bf16.mxu0 %v879
        %1199 = vmatpush2.bf16.msra.mxu0 %v878
        %1200 = vmatprep.subr.bf16.mxu0 %v875
        %1201 = vmatpush2.bf16.msra.mxu0 %v874
        %1202 = vmatprep.subr.bf16.mxu0 %v871
        %1203 = vmatpush2.bf16.msra.mxu0 %v870
        %1204 = vmatprep.subr.bf16.mxu0 %v867
        %1205 = vmatpush2.bf16.msra.mxu0 %v866
        %1206 = vmatprep.mubr.bf16.mxu0 %v295
        %1207 = vmatmul.mubr.bf16.gmra.mxu0 %v294
        %v1208 = vpop.f32.mrf.mxu0
        %v1209 = vadd.f32 %v439, %v1208
        %v1210 = vpop.f32.mrf.mxu0
        %v1211 = vadd.f32 %v443, %v1210
        %v1212 = vpop.f32.mrf.mxu0
        %v1213 = vadd.f32 %v439, %v1212
        %v1214 = vpop.f32.mrf.mxu0
        %v1215 = vadd.f32 %v443, %v1214
        %1216 = vdwg.mxu0
        %1217 = vmatprep.subr.bf16.mxu0 %v927
        %1218 = vmatpush1.bf16.msra.mxu0 %v926
        %1219 = vmatprep.subr.bf16.mxu0 %v923
        %1220 = vmatpush1.bf16.msra.mxu0 %v922
        %1221 = vmatprep.subr.bf16.mxu0 %v919
        %1222 = vmatpush1.bf16.msra.mxu0 %v918
        %1223 = vmatprep.subr.bf16.mxu0 %v915
        %1224 = vmatpush1.bf16.msra.mxu0 %v914
        %1225 = vmatprep.subr.bf16.mxu0 %v911
        %1226 = vmatpush1.bf16.msra.mxu0 %v910
        %1227 = vmatprep.subr.bf16.mxu0 %v907
        %1228 = vmatpush1.bf16.msra.mxu0 %v906
        %1229 = vmatprep.subr.bf16.mxu0 %v903
        %1230 = vmatpush1.bf16.msra.mxu0 %v902
        %1231 = vmatprep.subr.bf16.mxu0 %v899
        %1232 = vmatpush1.bf16.msra.mxu0 %v898
        %1233 = vmatprep.subr.bf16.mxu0 %v959
        %1234 = vmatpush2.bf16.msra.mxu0 %v958
        %1235 = vmatprep.subr.bf16.mxu0 %v955
        %1236 = vmatpush2.bf16.msra.mxu0 %v954
        %1237 = vmatprep.subr.bf16.mxu0 %v951
        %1238 = vmatpush2.bf16.msra.mxu0 %v950
        %1239 = vmatprep.subr.bf16.mxu0 %v947
        %1240 = vmatpush2.bf16.msra.mxu0 %v946
        %1241 = vmatprep.subr.bf16.mxu0 %v943
        %1242 = vmatpush2.bf16.msra.mxu0 %v942
        %1243 = vmatprep.subr.bf16.mxu0 %v939
        %1244 = vmatpush2.bf16.msra.mxu0 %v938
        %1245 = vmatprep.subr.bf16.mxu0 %v935
        %1246 = vmatpush2.bf16.msra.mxu0 %v934
        %1247 = vmatprep.subr.bf16.mxu0 %v931
        %1248 = vmatpush2.bf16.msra.mxu0 %v930
        %1249 = vmatprep.mubr.bf16.mxu0 %v297
        %1250 = vmatmul.mubr.bf16.gmra.mxu0 %v296
        %v1251 = vpop.f32.mrf.mxu0
        %v1252 = vadd.f32 %v1209, %v1251
        %v1253 = vpop.f32.mrf.mxu0
        %v1254 = vadd.f32 %v1211, %v1253
        %v1255 = vpop.f32.mrf.mxu0
        %v1256 = vadd.f32 %v1213, %v1255
        %v1257 = vpop.f32.mrf.mxu0
        %v1258 = vadd.f32 %v1215, %v1257
        %1259 = vdwg.mxu0
        %v1260 = vmax.f32 %v1166, 0.0
        %v1261 = vmax.f32 %v1168, 0.0
        %v1262 = vmax.f32 %v1252, 0.0
        %v1263 = vmax.f32 %v1254, 0.0
        %v1264 = vmax.f32 %v1170, 0.0
        %v1265 = vmax.f32 %v1172, 0.0
        %v1266 = vmax.f32 %v1256, 0.0
        %v1267 = vmax.f32 %v1258, 0.0
        %v1268 = vld [vmem:[#allocation7] sm:$0xf]
        %v1269 = vmul.f32 %v1268, 20.0
        %v1271 = vlaneseq
        %v1272 = vshrl.u32 %v1271, 7
        %v1273 = vsub.s32 0, %v1272
        %v1274 = vrot.slane %v1269, %v1273
        %v1275 = vlaneseq
        %v1276 = vshrl.u32 %v1275, 7
        %v1277 = vsub.s32 1, %v1276
        %v1278 = vrot.slane %v1269, %v1277
        %v1279 = vlaneseq
        %v1280 = vshrl.u32 %v1279, 7
        %v1281 = vsub.s32 2, %v1280
        %v1282 = vrot.slane %v1269, %v1281
        %v1283 = vlaneseq
        %v1284 = vshrl.u32 %v1283, 7
        %v1285 = vsub.s32 3, %v1284
        %v1286 = vrot.slane %v1269, %v1285
        %v1291 = vmul.f32 %v1260, %v1274
        %v1292 = vmul.f32 %v1261, %v1278
        %v1293 = vmul.f32 %v1262, %v1282
        %v1294 = vmul.f32 %v1263, %v1286
        %v1295 = vmul.f32 %v1264, %v1274
        %v1296 = vmul.f32 %v1265, %v1278
        %v1297 = vmul.f32 %v1266, %v1282
        %v1298 = vmul.f32 %v1267, %v1286
        %v1299 = vadd.f32 %v1291, %v1292
        %v1300 = vadd.f32 %v1299, %v1293
        %v1301 = vadd.f32 %v1300, %v1294
        %1302 = vadd.xlane.f32.xlu0 %v1301
        %v1303 = vpop.xlane.xlu0 %1302
        %v1304 = vadd.f32 %v1295, %v1296
        %v1305 = vadd.f32 %v1304, %v1297
        %v1306 = vadd.f32 %v1305, %v1298
        %1307 = vadd.xlane.f32.xlu0 %v1306
        %v1308 = vpop.xlane.xlu0 %1307
        %s1309 = sld [smem:[#allocation2]]
        %v1310 = vstv %s1309
        %v1311 = vadd.f32 %v1303, %v1310
        %v1312 = vadd.f32 %v1308, %v1310
        %v1313 = vxor.u32 %v1311, 2147483648
        %v1314 = vxor.u32 %v1312, 2147483648
        %v1315 = vmul.f32 %v1313, 1.442695
        %v1316 = vpow.pop %v1315
        %v1317 = vmul.f32 %v1314, 1.442695
        %v1318 = vpow.pop %v1317
        %v1319 = vadd.f32 %v1316, 1.0
        %v1320 = vadd.f32 %v1318, 1.0
        %v1321 = vrcp.pop %v1319
        %v1322 = vmul.f32 1.0, %v1321
        %v1323 = vrcp.pop %v1320
        %v1324 = vmul.f32 1.0, %v1323
        %vm1325 = vcmask 7168
        %1326 = vst.msk [vmem:[%s274] sm:$0xff] %vm1325, %v1322
        %1327 = vst.msk [vmem:[%s274 + $0x8] sm:$0xff] %vm1325, %v1324
        %s1328 = sand.u32 %s139, 1
        %s1329 = sand.u32 %s139, 1
        %s1330 = smul.addr %s1329, 16
        %s1331 = scalar_lea.vmem [#allocation8], %s1330
        // Predicated region
        $region53: #{tpu_custom_call.1} parent=39 // pred_check
          %p1332 = pneg %p149
        $region54: #{tpu_custom_call.1} parent=39 // pred_check_branch
          %1334 = sbr.rel (%p1332) target = $region56
        $region55: #{tpu_custom_call.1} parent=39 // pred_region
          %s1335 = smul.u32 2, %s21
          %s1336 = ssub.s32 3, %s1335
          %p1337 = scmp.lt.s32.totalorder %s1336, 2
          %s1338 = scalar_select %p1337, %s1336, 2
          %s1339 = smul.u32 128, %s1338
          %p1340 = scmp.ne.s32.totalorder 0, %s1339
          %s1341 = smul.addr %s1335, 8
          %s1342 = scalar_lea.vmem %s5, %s1341
          // Predicated region
          $region57: #{tpu_custom_call.1} parent=55 // pred_check
            %p1343 = pneg %p1340
          $region58: #{tpu_custom_call.1} parent=55 // pred_check_branch
            %1345 = sbr.rel (%p1343) target = $region60
          $region59: #{tpu_custom_call.1} parent=55 // pred_region
            // Predicated region
            $region61: #{tpu_custom_call.1} parent=59 // pred_check
              _
            $region62: #{tpu_custom_call.1} parent=59 // pred_check_branch
              %1347 = sbr.rel (0) target = $region64
            $region63: #{tpu_custom_call.1} parent=59 // pred_region
              // Predicated region
              $region83: #{tpu_custom_call.1} parent=63 // pred_check
                _
              $region84: #{tpu_custom_call.1} parent=63 // pred_check_branch
                %1399 = sbr.rel (0) target = $region86
              $region85: #{tpu_custom_call.1} parent=63 // pred_region
                %s1400 = sshrl.u32 %s1338, 1
                // While loop
                $region87: #{tpu_custom_call.1} parent=85 // loop_pre_header
                  _
                $region88: #{tpu_custom_call.1} parent=85 // loop_header
                  %s1402 = sphi 0, %s1404
                  %p1403 = scmp.ge.s32.totalorder %s1402, %s1400
                  %s1407 = sphi 0, %s1416
                  %s1408 = sphi %s1331, %s1419
                  %s1409 = sphi %s1342, %s1420
                $region89: #{tpu_custom_call.1} parent=85 // loop_header_branch
                  %1406 = sbr.rel (%p1403) target = $region93
                $region90: #{tpu_custom_call.1} parent=85 // loop_body
                  %v1410 = vld [vmem:[%s1408] sm:$0xff]
                  %1411 = vst [vmem:[%s1409] sm:$0xff] %v1410
                  %v1412 = vld [vmem:[%s1408 + $0x8] sm:$0xff]
                  %1413 = vst [vmem:[%s1409 + $0x8] sm:$0xff] %v1412
                  %s1414 = sadd.s32 1, %s1407
                  %p1415 = scmp.ge.s32.totalorder %s1414, %s1400
                  %s1416 = scalar_select %p1415, 0, %s1414
                  %s1417 = smul.u32 %s1416, 16
                  %s1418 = smul.u32 %s1416, 16
                  %s1419 = scalar_lea.vmem %s1331, %s1417 [#allocation8]
                  %s1420 = scalar_lea.vmem %s1342, %s1418
                $region91: #{tpu_custom_call.1} parent=85 // loop_footer
                  %s1404 = sadd.s32 %s1402, 1
                $region92: #{tpu_custom_call.1} parent=85 // loop_footer_branch
                  %1401 = sbr.rel target = $region88
                $region93: #{tpu_custom_call.1} parent=85 // loop_exit
                  _
                %s1421 = sshrl.u32 %s1338, 1
                %s1422 = sand.u32 %s1338, 1
                %s1423 = smul.u32 %s1421, 2
                %s1424 = smul.u32 8, %s1423
                %s1425 = scalar_lea.vmem %s1331, %s1424 [#allocation8]
                %s1426 = smul.u32 8, %s1423
                %s1427 = scalar_lea.vmem %s1342, %s1426
                // While loop
                $region94: #{tpu_custom_call.1} parent=85 // loop_pre_header
                  _
                $region95: #{tpu_custom_call.1} parent=85 // loop_header
                  %s1429 = sphi 0, %s1431
                  %p1430 = scmp.ge.s32.totalorder %s1429, %s1422
                  %s1434 = sphi 0, %s1441
                  %s1435 = sphi %s1425, %s1444
                  %s1436 = sphi %s1427, %s1445
                $region96: #{tpu_custom_call.1} parent=85 // loop_header_branch
                  %1433 = sbr.rel (%p1430) target = $region100
                $region97: #{tpu_custom_call.1} parent=85 // loop_body
                  %v1437 = vld [vmem:[%s1435] sm:$0xff]
                  %1438 = vst [vmem:[%s1436] sm:$0xff] %v1437
                  %s1439 = sadd.s32 1, %s1434
                  %p1440 = scmp.ge.s32.totalorder %s1439, %s1422
                  %s1441 = scalar_select %p1440, 0, %s1439
                  %s1442 = smul.u32 %s1441, 8
                  %s1443 = smul.u32 %s1441, 8
                  %s1444 = scalar_lea.vmem %s1425, %s1442 [#allocation8]
                  %s1445 = scalar_lea.vmem %s1427, %s1443
                $region98: #{tpu_custom_call.1} parent=85 // loop_footer
                  %s1431 = sadd.s32 %s1429, 1
                $region99: #{tpu_custom_call.1} parent=85 // loop_footer_branch
                  %1428 = sbr.rel target = $region95
                $region100: #{tpu_custom_call.1} parent=85 // loop_exit
                  _
              $region86: #{tpu_custom_call.1} parent=63 // pred_fallthru
                _
              // Predicated region
              $region101: #{tpu_custom_call.1} parent=63 // pred_check
                _
              $region102: #{tpu_custom_call.1} parent=63 // pred_check_branch
                %1447 = sbr.rel target = $region104
              $region103: #{tpu_custom_call.1} parent=63 // pred_region
                _
              $region104: #{tpu_custom_call.1} parent=63 // pred_fallthru
                _
            $region64: #{tpu_custom_call.1} parent=59 // pred_fallthru
              _
            // Predicated region
            $region65: #{tpu_custom_call.1} parent=59 // pred_check
              _
            $region66: #{tpu_custom_call.1} parent=59 // pred_check_branch
              %1349 = sbr.rel target = $region68
            $region67: #{tpu_custom_call.1} parent=59 // pred_region
              %s1351 = ssub.s32 256, 1
              %s1352 = sshrl.u32 %s1338, 1
              // While loop
              $region69: #{tpu_custom_call.1} parent=67 // loop_pre_header
                _
              $region70: #{tpu_custom_call.1} parent=67 // loop_header
                %s1354 = sphi 0, %s1356
                %p1355 = scmp.ge.s32.totalorder %s1354, %s1352
                %s1359 = sphi 0, %s1368
                %s1360 = sphi %s1331, %s1371
                %s1361 = sphi %s1342, %s1372
              $region71: #{tpu_custom_call.1} parent=67 // loop_header_branch
                %1358 = sbr.rel (%p1355) target = $region75
              $region72: #{tpu_custom_call.1} parent=67 // loop_body
                %v1362 = vld [vmem:[%s1360] sm:%s1351]
                %1363 = vst [vmem:[%s1361] sm:%s1351] %v1362
                %v1364 = vld [vmem:[%s1360 + $0x8] sm:%s1351]
                %1365 = vst [vmem:[%s1361 + $0x8] sm:%s1351] %v1364
                %s1366 = sadd.s32 1, %s1359
                %p1367 = scmp.ge.s32.totalorder %s1366, %s1352
                %s1368 = scalar_select %p1367, 0, %s1366
                %s1369 = smul.u32 %s1368, 16
                %s1370 = smul.u32 %s1368, 16
                %s1371 = scalar_lea.vmem %s1331, %s1369 [#allocation8]
                %s1372 = scalar_lea.vmem %s1342, %s1370
              $region73: #{tpu_custom_call.1} parent=67 // loop_footer
                %s1356 = sadd.s32 %s1354, 1
              $region74: #{tpu_custom_call.1} parent=67 // loop_footer_branch
                %1353 = sbr.rel target = $region70
              $region75: #{tpu_custom_call.1} parent=67 // loop_exit
                _
              %s1373 = sshrl.u32 %s1338, 1
              %s1374 = sand.u32 %s1338, 1
              %s1375 = smul.u32 %s1373, 2
              %s1376 = smul.u32 8, %s1375
              %s1377 = scalar_lea.vmem %s1331, %s1376 [#allocation8]
              %s1378 = smul.u32 8, %s1375
              %s1379 = scalar_lea.vmem %s1342, %s1378
              // While loop
              $region76: #{tpu_custom_call.1} parent=67 // loop_pre_header
                _
              $region77: #{tpu_custom_call.1} parent=67 // loop_header
                %s1381 = sphi 0, %s1383
                %p1382 = scmp.ge.s32.totalorder %s1381, %s1374
                %s1386 = sphi 0, %s1393
                %s1387 = sphi %s1377, %s1396
                %s1388 = sphi %s1379, %s1397
              $region78: #{tpu_custom_call.1} parent=67 // loop_header_branch
                %1385 = sbr.rel (%p1382) target = $region82
              $region79: #{tpu_custom_call.1} parent=67 // loop_body
                %v1389 = vld [vmem:[%s1387] sm:%s1351]
                %1390 = vst [vmem:[%s1388] sm:%s1351] %v1389
                %s1391 = sadd.s32 1, %s1386
                %p1392 = scmp.ge.s32.totalorder %s1391, %s1374
                %s1393 = scalar_select %p1392, 0, %s1391
                %s1394 = smul.u32 %s1393, 8
                %s1395 = smul.u32 %s1393, 8
                %s1396 = scalar_lea.vmem %s1377, %s1394 [#allocation8]
                %s1397 = scalar_lea.vmem %s1379, %s1395
              $region80: #{tpu_custom_call.1} parent=67 // loop_footer
                %s1383 = sadd.s32 %s1381, 1
              $region81: #{tpu_custom_call.1} parent=67 // loop_footer_branch
                %1380 = sbr.rel target = $region77
              $region82: #{tpu_custom_call.1} parent=67 // loop_exit
                _
            $region68: #{tpu_custom_call.1} parent=59 // pred_fallthru
              _
          $region60: #{tpu_custom_call.1} parent=55 // pred_fallthru
            _
          %1448 = vnop
        $region56: #{tpu_custom_call.1} parent=39 // pred_fallthru
          _
      $region40: #{tpu_custom_call.1} parent=5 // pred_fallthru
        _
      %p1449 = scmp.le.s32.totalorder 2, %s16
      // Predicated region
      $region105: #{tpu_custom_call.1} parent=5 // pred_check
        %p1450 = pneg %p1449
      $region106: #{tpu_custom_call.1} parent=5 // pred_check_branch
        %1452 = sbr.rel (%p1450) target = $region108
      $region107: #{tpu_custom_call.1} parent=5 // pred_region
        %s1453 = ssub.s32 %s16, 2
        // Predicated region
        $region109: #{tpu_custom_call.1} parent=107 // pred_check
          %p1454 = pneg %p155
        $region110: #{tpu_custom_call.1} parent=107 // pred_check_branch
          %1456 = sbr.rel (%p1454) target = $region112
        $region111: #{tpu_custom_call.1} parent=107 // pred_region
          %s1457 = sand.u32 %s140, 1
          %s1458 = sand.u32 %s140, 1
          %s1459 = smul.addr %s1458, 16
          %s1460 = scalar_lea.vmem [#allocation8], %s1459
        $region112: #{tpu_custom_call.1} parent=107 // pred_fallthru
          _
      $region108: #{tpu_custom_call.1} parent=5 // pred_fallthru
        _
    $region6: #{tpu_custom_call.1} parent=1 // loop_footer
      %s20 = sadd.s32 1, %s16
    $region7: #{tpu_custom_call.1} parent=1 // loop_footer_branch
      %15 = sbr.rel target = $region3
    $region8: #{tpu_custom_call.1} parent=1 // loop_exit
      _
    %1461 = vsyncpa [#allocation4], 1
    %s1462 = scalar_lea.sflag [#allocation4], 1
    %1463 = vsyncpa %s1462, 1
    %1464 = vsyncpa [#allocation6], 1

// kernel: tpu_custom_call.1
$region0: #{tpu_custom_call.1}
  #allocation0 [shape = 'u32[]', space=smem, size = 0x4, offset = 0x4, fixed_abs, tag = 'smem constant byte address 0x4 - core index']
  #allocation1 [shape = 'u32[144,128]{1,0:T(1,128)}', space=vmem, size = 0x12000, scoped, tag = 'internal scratch']
  #allocation2 [shape = 'f32[1,1]{1,0:T(1,128)S(6)}', space=smem, size = 0x200, scoped, tag = 'scoped memory for tpu_custom_call.1']
  %s0 = inlined_call_operand.hbm [shape: f32[20,512], index: 0, kind: input, shape index: {}]
  %s1 = inlined_call_operand.hbm [shape: bf16[512,512], index: 1, kind: input, shape index: {}]
  %s2 = inlined_call_operand.vmem [shape: f32[1,512], index: 2, kind: input, shape index: {}]
  %s3 = inlined_call_operand.hbm [shape: f32[1,512], index: 3, kind: input, shape index: {}]
  %s4 = inlined_call_operand.<no memory space> [shape: f32[1,1], index: 4, kind: input, shape index: {}]
  %s5 = inlined_call_operand.vmem [shape: f32[20,1], index: 5, kind: output, shape index: {}]
  %s6 = sld [smem:[#allocation0]]
  $region113: #{tpu_custom_call.1} parent=0
    _
  %s8 = ssub.s32 1, %s6
  %s9 = scalar_select 0, %s8, %s6
  %10 = sst [smem:[#allocation2]] %s4
  $region1: #{tpu_custom_call.1} parent=0
    #allocation3 [shape = 'u8[65536]{0}', space=vmem, size = 0x10000, scoped, tag = 'input window, operand 0']
    #allocation4 [shape = 's32[2]{0}', space=sflag, size = 0x8, scoped, tag = 'scoped memory for tpu_custom_call.1']
    #allocation5 [shape = 'u8[524288]{0}', space=vmem, size = 0x80000, scoped, tag = 'input window, operand 1, single buffered']
    #allocation6 [shape = 's32[1]{0}', space=sflag, size = 0x4, scoped, tag = 'scoped memory for tpu_custom_call.1']
    #allocation7 [shape = 'u8[2048]{0}', space=vmem, size = 0x800, scoped, tag = 'input window, operand 3, single buffered']
    #allocation8 [shape = 'u8[16384]{0}', space=vmem, size = 0x4000, scoped, tag = 'output window, operand 0']
    %11 = vsyncpa [#allocation4], 0
    %s12 = scalar_lea.sflag [#allocation4], 1
    %13 = vsyncpa %s12, 0
    %14 = vsyncpa [#allocation6], 0
    loop: start=0, step=1, limit=4
    $region2: #{tpu_custom_call.1} parent=1 // loop_pre_header
      _
    $region3: #{tpu_custom_call.1} parent=1 // loop_header
      %s16 = sphi 0, %s20
      %p17 = scmp.ge.s32.totalorder %s16, 4
      %s26 = sphi 0, %s28
      %s29 = sphi 0, %s26
      %s30 = sphi 0, %s29
      %s46 = sphi 0, %s30
      %s50 = sphi 0, %s50
      %s52 = sphi 0, %s50
      %s53 = sphi 0, %s52
      %s67 = sphi 0, %s53
      %s71 = sphi 0, %s71
      %s73 = sphi 0, %s71
      %s74 = sphi 0, %s73
      %s88 = sphi 0, %s74
      %s92 = sphi 0, %s92
      %s94 = sphi 0, %s92
      %s95 = sphi 0, %s94
      %s109 = sphi 0, %s95
      %s113 = sphi 0, %s113
      %s115 = sphi 0, %s113
      %s116 = sphi 0, %s115
      %s130 = sphi 0, %s116
      %s136 = sphi 0, %s138
      %s139 = sphi 0, %s136
      %s140 = sphi 0, %s139
      %s156 = sphi 0, %s140
    $region4: #{tpu_custom_call.1} parent=1 // loop_header_branch
      %19 = sbr.rel (%p17) target = $region8
    $region5: #{tpu_custom_call.1} parent=1 // loop_body
      %s21 = ssub.s32 %s16, 1
      %s22 = ssub.s32 %s16, 2
      %s23 = sadd.s32 %s16, 1
      %s24 = ssub.s32 %s16, %s23
      %p25 = scmp.eq.s32.totalorder %s24, 0
      %s27 = sadd.s32 %s26, 1
      %s28 = scalar_select %p25, %s26, %s27
      %p31 = pneg %p25
      %p32 = scmp.eq.s32.totalorder %s16, 1
      %p33 = por %p31, %p32
      %p34 = scmp.ne.s32.totalorder %s26, %s29
      %p35 = scmp.eq.s32.totalorder %s16, 0
      %p36 = por %p34, %p35
      %p37 = scmp.ne.s32.totalorder %s26, %s29
      %p38 = scmp.eq.s32.totalorder %s21, 1
      %p39 = por %p37, %p38
      %p40 = scmp.ne.s32.totalorder %s29, %s30
      %p41 = scmp.eq.s32.totalorder %s21, 0
      %p42 = por %p40, %p41
      %p43 = scmp.ne.s32.totalorder %s29, %s30
      %p44 = scmp.eq.s32.totalorder %s22, 1
      %p45 = por %p43, %p44
      %p47 = scmp.ne.s32.totalorder %s30, %s46
      %p48 = scmp.eq.s32.totalorder %s22, 0
      %p49 = por %p47, %p48
      %s51 = sadd.s32 %s50, 1
      %p54 = scmp.eq.s32.totalorder %s16, 1
      %p55 = scmp.ne.s32.totalorder %s50, %s52
      %p56 = scmp.eq.s32.totalorder %s16, 0
      %p57 = por %p55, %p56
      %p58 = scmp.ne.s32.totalorder %s50, %s52
      %p59 = scmp.eq.s32.totalorder %s21, 1
      %p60 = por %p58, %p59
      %p61 = scmp.ne.s32.totalorder %s52, %s53
      %p62 = scmp.eq.s32.totalorder %s21, 0
      %p63 = por %p61, %p62
      %p64 = scmp.ne.s32.totalorder %s52, %s53
      %p65 = scmp.eq.s32.totalorder %s22, 1
      %p66 = por %p64, %p65
      %p68 = scmp.ne.s32.totalorder %s53, %s67
      %p69 = scmp.eq.s32.totalorder %s22, 0
      %p70 = por %p68, %p69
      %s72 = sadd.s32 %s71, 1
      %p75 = scmp.eq.s32.totalorder %s16, 1
      %p76 = scmp.ne.s32.totalorder %s71, %s73
      %p77 = scmp.eq.s32.totalorder %s16, 0
      %p78 = por %p76, %p77
      %p79 = scmp.ne.s32.totalorder %s71, %s73
      %p80 = scmp.eq.s32.totalorder %s21, 1
      %p81 = por %p79, %p80
      %p82 = scmp.ne.s32.totalorder %s73, %s74
      %p83 = scmp.eq.s32.totalorder %s21, 0
      %p84 = por %p82, %p83
      %p85 = scmp.ne.s32.totalorder %s73, %s74
      %p86 = scmp.eq.s32.totalorder %s22, 1
      %p87 = por %p85, %p86
      %p89 = scmp.ne.s32.totalorder %s74, %s88
      %p90 = scmp.eq.s32.totalorder %s22, 0
      %p91 = por %p89, %p90
      %s93 = sadd.s32 %s92, 1
      %p96 = scmp.eq.s32.totalorder %s16, 1
      %p97 = scmp.ne.s32.totalorder %s92, %s94
      %p98 = scmp.eq.s32.totalorder %s16, 0
      %p99 = por %p97, %p98
      %p100 = scmp.ne.s32.totalorder %s92, %s94
      %p101 = scmp.eq.s32.totalorder %s21, 1
      %p102 = por %p100, %p101
      %p103 = scmp.ne.s32.totalorder %s94, %s95
      %p104 = scmp.eq.s32.totalorder %s21, 0
      %p105 = por %p103, %p104
      %p106 = scmp.ne.s32.totalorder %s94, %s95
      %p107 = scmp.eq.s32.totalorder %s22, 1
      %p108 = por %p106, %p107
      %p110 = scmp.ne.s32.totalorder %s95, %s109
      %p111 = scmp.eq.s32.totalorder %s22, 0
      %p112 = por %p110, %p111
      %s114 = sadd.s32 %s113, 1
      %p117 = scmp.eq.s32.totalorder %s16, 1
      %p118 = scmp.ne.s32.totalorder %s113, %s115
      %p119 = scmp.eq.s32.totalorder %s16, 0
      %p120 = por %p118, %p119
      %p121 = scmp.ne.s32.totalorder %s113, %s115
      %p122 = scmp.eq.s32.totalorder %s21, 1
      %p123 = por %p121, %p122
      %p124 = scmp.ne.s32.totalorder %s115, %s116
      %p125 = scmp.eq.s32.totalorder %s21, 0
      %p126 = por %p124, %p125
      %p127 = scmp.ne.s32.totalorder %s115, %s116
      %p128 = scmp.eq.s32.totalorder %s22, 1
      %p129 = por %p127, %p128
      %p131 = scmp.ne.s32.totalorder %s116, %s130
      %p132 = scmp.eq.s32.totalorder %s22, 0
      %p133 = por %p131, %p132
      %s134 = ssub.s32 %s16, %s23
      %p135 = scmp.eq.s32.totalorder %s134, 0
      %s137 = sadd.s32 %s136, 1
      %s138 = scalar_select %p135, %s136, %s137
      %p141 = pneg %p135
      %p142 = scmp.eq.s32.totalorder %s16, 1
      %p143 = por %p141, %p142
      %p144 = scmp.ne.s32.totalorder %s136, %s139
      %p145 = scmp.eq.s32.totalorder %s16, 0
      %p146 = por %p144, %p145
      %p147 = scmp.ne.s32.totalorder %s136, %s139
      %p148 = scmp.eq.s32.totalorder %s21, 1
      %p149 = por %p147, %p148
      %p150 = scmp.ne.s32.totalorder %s139, %s140
      %p151 = scmp.eq.s32.totalorder %s21, 0
      %p152 = por %p150, %p151
      %p153 = scmp.ne.s32.totalorder %s139, %s140
      %p154 = scmp.eq.s32.totalorder %s22, 1
      %p155 = por %p153, %p154
      %p157 = scmp.ne.s32.totalorder %s140, %s156
      %p158 = scmp.eq.s32.totalorder %s22, 0
      %p159 = por %p157, %p158
      %p160 = scmp.le.s32.totalorder 1, %s16
      %p161 = scmp.lt.s32.totalorder %s16, 3
      %p162 = pnand %p160, %p161
      %p163 = pneg %p162
      // Predicated region
      $region9: #{tpu_custom_call.1} parent=5 // pred_check
        _
      $region10: #{tpu_custom_call.1} parent=5 // pred_check_branch
        %165 = sbr.rel (%p162) target = $region12
      $region11: #{tpu_custom_call.1} parent=5 // pred_region
        %s166 = ssub.s32 %s16, 1
        // Predicated region
        $region13: #{tpu_custom_call.1} parent=11 // pred_check
          %p167 = pneg %p63
        $region14: #{tpu_custom_call.1} parent=11 // pred_check_branch
          %169 = sbr.rel (%p167) target = $region16
        $region15: #{tpu_custom_call.1} parent=11 // pred_region
          %s171 = ssub.s32 16384, 16384
          %172 = vsyncadd [#allocation6], %s171
          %s173 = sshll.u32 [#allocation5], 4
          %s174 = int_to_ptr.vmem [resolvable:$true] %s173
          %179 = dma.hbm_to_vmem [thread:$0]  %s1, 16384, %s174, [#allocation6], 256, 256, 16
        $region16: #{tpu_custom_call.1} parent=11 // pred_fallthru
          _
        // Predicated region
        $region17: #{tpu_custom_call.1} parent=11 // pred_check
          %p180 = pneg %p84
        $region18: #{tpu_custom_call.1} parent=11 // pred_check_branch
          %182 = sbr.rel (%p180) target = $region20
        $region19: #{tpu_custom_call.1} parent=11 // pred_region
          _
        $region20: #{tpu_custom_call.1} parent=11 // pred_fallthru
          _
        // Predicated region
        $region21: #{tpu_custom_call.1} parent=11 // pred_check
          %p183 = pneg %p105
        $region22: #{tpu_custom_call.1} parent=11 // pred_check_branch
          %185 = sbr.rel (%p183) target = $region24
        $region23: #{tpu_custom_call.1} parent=11 // pred_region
          %s187 = ssub.s32 64, 64
          %188 = vsyncadd [#allocation6], %s187
          %s190 = sshll.u32 [#allocation7], 4
          %s191 = int_to_ptr.vmem [resolvable:$true] %s190
          %193 = dma.hbm_to_vmem [thread:$0]  %s3, 64, %s191, [#allocation6]
        $region24: #{tpu_custom_call.1} parent=11 // pred_fallthru
          _
        // Predicated region
        $region25: #{tpu_custom_call.1} parent=11 // pred_check
          %p194 = pneg %p126
        $region26: #{tpu_custom_call.1} parent=11 // pred_check_branch
          %196 = sbr.rel (%p194) target = $region28
        $region27: #{tpu_custom_call.1} parent=11 // pred_region
          _
        $region28: #{tpu_custom_call.1} parent=11 // pred_fallthru
          _
      $region12: #{tpu_custom_call.1} parent=5 // pred_fallthru
        _
      %p197 = scmp.lt.s32.totalorder %s16, 2
      // Predicated region
      $region29: #{tpu_custom_call.1} parent=5 // pred_check
        %p198 = pneg %p197
      $region30: #{tpu_custom_call.1} parent=5 // pred_check_branch
        %200 = sbr.rel (%p198) target = $region32
      $region31: #{tpu_custom_call.1} parent=5 // pred_region
        // Predicated region
        $region33: #{tpu_custom_call.1} parent=31 // pred_check
          %p201 = pneg %p36
        $region34: #{tpu_custom_call.1} parent=31 // pred_check_branch
          %203 = sbr.rel (%p201) target = $region36
        $region35: #{tpu_custom_call.1} parent=31 // pred_region
          %s204 = sand.u32 %s26, 1
          %s205 = scalar_lea.sflag [#allocation4], %s204
          %s206 = sand.u32 %s26, 1
          %s207 = smul.addr %s206, 64
          %s208 = scalar_lea.vmem [#allocation3], %s207
          %s209 = smul.u32 2, %s16
          %s210 = ssub.s32 3, %s209
          %p211 = scmp.lt.s32.totalorder %s210, 2
          %s212 = scalar_select %p211, %s210, 2
          %s213 = smul.u32 128, %s212
          %s214 = smul.u32 %s213, 4
          %s216 = ssub.s32 1024, %s214
          %217 = vsyncadd %s205, %s216
          %p218 = scmp.ne.s32.totalorder 0, %s214
          %s219 = smul.addr %s209, 4
          %s220 = smul.addr %s219, 128
          %s221 = scalar_lea.hbm %s0, %s220
          %s222 = smul.u32 32, %s212
          %s223 = sshll.u32 %s208, 4
          %s224 = int_to_ptr.vmem [resolvable:$true] %s223
          %s225 = sshll.u32 %s222, 4
          %229 = dma.hbm_to_vmem [thread:$0]  (%p218), %s221, %s225, %s224, %s205, 512, 512, 32
        $region36: #{tpu_custom_call.1} parent=31 // pred_fallthru
          _
      $region32: #{tpu_custom_call.1} parent=5 // pred_fallthru
        _
      %p230 = scmp.le.s32.totalorder 1, %s16
      %p231 = scmp.lt.s32.totalorder %s16, 3
      %p232 = pnand %p230, %p231
      %p233 = pneg %p232
      // Predicated region
      $region37: #{tpu_custom_call.1} parent=5 // pred_check
        _
      $region38: #{tpu_custom_call.1} parent=5 // pred_check_branch
        %235 = sbr.rel (%p232) target = $region40
      $region39: #{tpu_custom_call.1} parent=5 // pred_region
        %s236 = ssub.s32 %s16, 1
        %s237 = sand.u32 %s29, 1
        %s238 = scalar_lea.sflag [#allocation4], %s237
        %s239 = sand.u32 %s29, 1
        %s240 = smul.addr %s239, 64
        %s241 = scalar_lea.vmem [#allocation3], %s240
        // Predicated region
        $region41: #{tpu_custom_call.1} parent=39 // pred_check
          %p242 = pneg %p42
        $region42: #{tpu_custom_call.1} parent=39 // pred_check_branch
          %244 = sbr.rel (%p242) target = $region44
        $region43: #{tpu_custom_call.1} parent=39 // pred_region
          %245 = dma.done %s238, 1024
        $region44: #{tpu_custom_call.1} parent=39 // pred_fallthru
          _
        // Predicated region
        $region45: #{tpu_custom_call.1} parent=39 // pred_check
          %p246 = pneg %p63
        $region46: #{tpu_custom_call.1} parent=39 // pred_check_branch
          %248 = sbr.rel (%p246) target = $region48
        $region47: #{tpu_custom_call.1} parent=39 // pred_region
          %249 = dma.done [#allocation6], 16384
        $region48: #{tpu_custom_call.1} parent=39 // pred_fallthru
          _
        // Predicated region
        $region49: #{tpu_custom_call.1} parent=39 // pred_check
          %p250 = pneg %p105
        $region50: #{tpu_custom_call.1} parent=39 // pred_check_branch
          %252 = sbr.rel (%p250) target = $region52
        $region51: #{tpu_custom_call.1} parent=39 // pred_region
          %253 = dma.done [#allocation6], 64
        $region52: #{tpu_custom_call.1} parent=39 // pred_fallthru
          _
        %s254 = sand.u32 %s29, 1
        %s255 = scalar_lea.sflag [#allocation4], %s254
        %s256 = sand.u32 %s29, 1
        %s257 = smul.addr %s256, 64
        %s258 = scalar_lea.vmem [#allocation3], %s257
        %p259 = pneg %p42
        %p260 = pneg %p39
        %p261 = pneg %p63
        %p262 = pneg %p60
        %p263 = pneg %p84
        %p264 = pneg %p81
        %p265 = pneg %p105
        %p266 = pneg %p102
        %p267 = pneg %p126
        %p268 = pneg %p123
        %p269 = pneg %p152
        %p270 = pneg %p149
        %s271 = sand.u32 %s139, 1
        %s272 = sand.u32 %s139, 1
        %s273 = smul.addr %s272, 16
        %s274 = scalar_lea.vmem [#allocation8], %s273
        %s275 = smul.u32 2, %s21
        %s276 = ssub.s32 3, %s275
        %p277 = scmp.lt.s32.totalorder %s276, 2
        %s278 = scalar_select %p277, %s276, 2
        %s279 = smul.u32 128, %s278
        %s280 = smul.u32 %s279, 4
        %s281 = smul.u32 2, %s21
        %s282 = ssub.s32 3, %s281
        %p283 = scmp.lt.s32.totalorder %s282, 2
        %s284 = scalar_select %p283, %s282, 2
        %s285 = smul.u32 128, %s284
        %v286 = vld [vmem:[%s241] sm:$0xff]
        %v287 = vld [vmem:[%s241 + $0x8] sm:$0xff]
        %v288 = vld [vmem:[%s241 + $0x10] sm:$0xff]
        %v289 = vld [vmem:[%s241 + $0x18] sm:$0xff]
        %v290 = vld [vmem:[%s241 + $0x20] sm:$0xff]
        %v291 = vld [vmem:[%s241 + $0x28] sm:$0xff]
        %v292 = vld [vmem:[%s241 + $0x30] sm:$0xff]
        %v293 = vld [vmem:[%s241 + $0x38] sm:$0xff]
        %v294 = vpack.c.bf16 %v290, %v286
        %v295 = vpack.c.bf16 %v291, %v287
        %v296 = vpack.c.bf16 %v292, %v288
        %v297 = vpack.c.bf16 %v293, %v289
        %v298 = vld [vmem:[#allocation5] sm:$0xff]
        %v299 = vld [vmem:[#allocation5 + $0x8] sm:$0xff]
        %v300 = vld [vmem:[#allocation5 + $0x10] sm:$0xff]
        %v301 = vld [vmem:[#allocation5 + $0x18] sm:$0xff]
        %v302 = vld [vmem:[#allocation5 + $0x20] sm:$0xff]
        %v303 = vld [vmem:[#allocation5 + $0x28] sm:$0xff]
        %v304 = vld [vmem:[#allocation5 + $0x30] sm:$0xff]
        %v305 = vld [vmem:[#allocation5 + $0x38] sm:$0xff]
        %v306 = vld [vmem:[#allocation5 + $0x40] sm:$0xff]
        %v307 = vld [vmem:[#allocation5 + $0x48] sm:$0xff]
        %v308 = vld [vmem:[#allocation5 + $0x50] sm:$0xff]
        %v309 = vld [vmem:[#allocation5 + $0x58] sm:$0xff]
        %v310 = vld [vmem:[#allocation5 + $0x60] sm:$0xff]
        %v311 = vld [vmem:[#allocation5 + $0x68] sm:$0xff]
        %v312 = vld [vmem:[#allocation5 + $0x70] sm:$0xff]
        %v313 = vld [vmem:[#allocation5 + $0x78] sm:$0xff]
        %v314 = vld [vmem:[#allocation5 + $0x80] sm:$0xff]
        %v315 = vld [vmem:[#allocation5 + $0x88] sm:$0xff]
        %v316 = vld [vmem:[#allocation5 + $0x90] sm:$0xff]
        %v317 = vld [vmem:[#allocation5 + $0x98] sm:$0xff]
        %v318 = vld [vmem:[#allocation5 + $0xa0] sm:$0xff]
        %v319 = vld [vmem:[#allocation5 + $0xa8] sm:$0xff]
        %v320 = vld [vmem:[#allocation5 + $0xb0] sm:$0xff]
        %v321 = vld [vmem:[#allocation5 + $0xb8] sm:$0xff]
        %v322 = vld [vmem:[#allocation5 + $0xc0] sm:$0xff]
        %v323 = vld [vmem:[#allocation5 + $0xc8] sm:$0xff]
        %v324 = vld [vmem:[#allocation5 + $0xd0] sm:$0xff]
        %v325 = vld [vmem:[#allocation5 + $0xd8] sm:$0xff]
        %v326 = vld [vmem:[#allocation5 + $0xe0] sm:$0xff]
        %v327 = vld [vmem:[#allocation5 + $0xe8] sm:$0xff]
        %v328 = vld [vmem:[#allocation5 + $0xf0] sm:$0xff]
        %v329 = vld [vmem:[#allocation5 + $0xf8] sm:$0xff]
        %v330 = vld [vmem:[#allocation5 + $0x100] sm:$0xff]
        %v331 = vld [vmem:[#allocation5 + $0x108] sm:$0xff]
        %v332 = vld [vmem:[#allocation5 + $0x110] sm:$0xff]
        %v333 = vld [vmem:[#allocation5 + $0x118] sm:$0xff]
        %v334 = vld [vmem:[#allocation5 + $0x120] sm:$0xff]
        %v335 = vld [vmem:[#allocation5 + $0x128] sm:$0xff]
        %v336 = vld [vmem:[#allocation5 + $0x130] sm:$0xff]
        %v337 = vld [vmem:[#allocation5 + $0x138] sm:$0xff]
        %v338 = vld [vmem:[#allocation5 + $0x140] sm:$0xff]
        %v339 = vld [vmem:[#allocation5 + $0x148] sm:$0xff]
        %v340 = vld [vmem:[#allocation5 + $0x150] sm:$0xff]
        %v341 = vld [vmem:[#allocation5 + $0x158] sm:$0xff]
        %v342 = vld [vmem:[#allocation5 + $0x160] sm:$0xff]
        %v343 = vld [vmem:[#allocation5 + $0x168] sm:$0xff]
        %v344 = vld [vmem:[#allocation5 + $0x170] sm:$0xff]
        %v345 = vld [vmem:[#allocation5 + $0x178] sm:$0xff]
        %v346 = vld [vmem:[#allocation5 + $0x180] sm:$0xff]
        %v347 = vld [vmem:[#allocation5 + $0x188] sm:$0xff]
        %v348 = vld [vmem:[#allocation5 + $0x190] sm:$0xff]
        %v349 = vld [vmem:[#allocation5 + $0x198] sm:$0xff]
        %v350 = vld [vmem:[#allocation5 + $0x1a0] sm:$0xff]
        %v351 = vld [vmem:[#allocation5 + $0x1a8] sm:$0xff]
        %v352 = vld [vmem:[#allocation5 + $0x1b0] sm:$0xff]
        %v353 = vld [vmem:[#allocation5 + $0x1b8] sm:$0xff]
        %v354 = vld [vmem:[#allocation5 + $0x1c0] sm:$0xff]
        %v355 = vld [vmem:[#allocation5 + $0x1c8] sm:$0xff]
        %v356 = vld [vmem:[#allocation5 + $0x1d0] sm:$0xff]
        %v357 = vld [vmem:[#allocation5 + $0x1d8] sm:$0xff]
        %v358 = vld [vmem:[#allocation5 + $0x1e0] sm:$0xff]
        %v359 = vld [vmem:[#allocation5 + $0x1e8] sm:$0xff]
        %v360 = vld [vmem:[#allocation5 + $0x1f0] sm:$0xff]
        %v361 = vld [vmem:[#allocation5 + $0x1f8] sm:$0xff]
        %v362 = vld [vmem:[#allocation5 + $0x200] sm:$0xff]
        %v363 = vld [vmem:[#allocation5 + $0x208] sm:$0xff]
        %v364 = vld [vmem:[#allocation5 + $0x210] sm:$0xff]
        %v365 = vld [vmem:[#allocation5 + $0x218] sm:$0xff]
        %v366 = vld [vmem:[#allocation5 + $0x220] sm:$0xff]
        %v367 = vld [vmem:[#allocation5 + $0x228] sm:$0xff]
        %v368 = vld [vmem:[#allocation5 + $0x230] sm:$0xff]
        %v369 = vld [vmem:[#allocation5 + $0x238] sm:$0xff]
        %v370 = vld [vmem:[#allocation5 + $0x240] sm:$0xff]
        %v371 = vld [vmem:[#allocation5 + $0x248] sm:$0xff]
        %v372 = vld [vmem:[#allocation5 + $0x250] sm:$0xff]
        %v373 = vld [vmem:[#allocation5 + $0x258] sm:$0xff]
        %v374 = vld [vmem:[#allocation5 + $0x260] sm:$0xff]
        %v375 = vld [vmem:[#allocation5 + $0x268] sm:$0xff]
        %v376 = vld [vmem:[#allocation5 + $0x270] sm:$0xff]
        %v377 = vld [vmem:[#allocation5 + $0x278] sm:$0xff]
        %v378 = vld [vmem:[#allocation5 + $0x280] sm:$0xff]
        %v379 = vld [vmem:[#allocation5 + $0x288] sm:$0xff]
        %v380 = vld [vmem:[#allocation5 + $0x290] sm:$0xff]
        %v381 = vld [vmem:[#allocation5 + $0x298] sm:$0xff]
        %v382 = vld [vmem:[#allocation5 + $0x2a0] sm:$0xff]
        %v383 = vld [vmem:[#allocation5 + $0x2a8] sm:$0xff]
        %v384 = vld [vmem:[#allocation5 + $0x2b0] sm:$0xff]
        %v385 = vld [vmem:[#allocation5 + $0x2b8] sm:$0xff]
        %v386 = vld [vmem:[#allocation5 + $0x2c0] sm:$0xff]
        %v387 = vld [vmem:[#allocation5 + $0x2c8] sm:$0xff]
        %v388 = vld [vmem:[#allocation5 + $0x2d0] sm:$0xff]
        %v389 = vld [vmem:[#allocation5 + $0x2d8] sm:$0xff]
        %v390 = vld [vmem:[#allocation5 + $0x2e0] sm:$0xff]
        %v391 = vld [vmem:[#allocation5 + $0x2e8] sm:$0xff]
        %v392 = vld [vmem:[#allocation5 + $0x2f0] sm:$0xff]
        %v393 = vld [vmem:[#allocation5 + $0x2f8] sm:$0xff]
        %v394 = vld [vmem:[#allocation5 + $0x300] sm:$0xff]
        %v395 = vld [vmem:[#allocation5 + $0x308] sm:$0xff]
        %v396 = vld [vmem:[#allocation5 + $0x310] sm:$0xff]
        %v397 = vld [vmem:[#allocation5 + $0x318] sm:$0xff]
        %v398 = vld [vmem:[#allocation5 + $0x320] sm:$0xff]
        %v399 = vld [vmem:[#allocation5 + $0x328] sm:$0xff]
        %v400 = vld [vmem:[#allocation5 + $0x330] sm:$0xff]
        %v401 = vld [vmem:[#allocation5 + $0x338] sm:$0xff]
        %v402 = vld [vmem:[#allocation5 + $0x340] sm:$0xff]
        %v403 = vld [vmem:[#allocation5 + $0x348] sm:$0xff]
        %v404 = vld [vmem:[#allocation5 + $0x350] sm:$0xff]
        %v405 = vld [vmem:[#allocation5 + $0x358] sm:$0xff]
        %v406 = vld [vmem:[#allocation5 + $0x360] sm:$0xff]
        %v407 = vld [vmem:[#allocation5 + $0x368] sm:$0xff]
        %v408 = vld [vmem:[#allocation5 + $0x370] sm:$0xff]
        %v409 = vld [vmem:[#allocation5 + $0x378] sm:$0xff]
        %v410 = vld [vmem:[#allocation5 + $0x380] sm:$0xff]
        %v411 = vld [vmem:[#allocation5 + $0x388] sm:$0xff]
        %v412 = vld [vmem:[#allocation5 + $0x390] sm:$0xff]
        %v413 = vld [vmem:[#allocation5 + $0x398] sm:$0xff]
        %v414 = vld [vmem:[#allocation5 + $0x3a0] sm:$0xff]
        %v415 = vld [vmem:[#allocation5 + $0x3a8] sm:$0xff]
        %v416 = vld [vmem:[#allocation5 + $0x3b0] sm:$0xff]
        %v417 = vld [vmem:[#allocation5 + $0x3b8] sm:$0xff]
        %v418 = vld [vmem:[#allocation5 + $0x3c0] sm:$0xff]
        %v419 = vld [vmem:[#allocation5 + $0x3c8] sm:$0xff]
        %v420 = vld [vmem:[#allocation5 + $0x3d0] sm:$0xff]
        %v421 = vld [vmem:[#allocation5 + $0x3d8] sm:$0xff]
        %v422 = vld [vmem:[#allocation5 + $0x3e0] sm:$0xff]
        %v423 = vld [vmem:[#allocation5 + $0x3e8] sm:$0xff]
        %v424 = vld [vmem:[#allocation5 + $0x3f0] sm:$0xff]
        %v425 = vld [vmem:[#allocation5 + $0x3f8] sm:$0xff]
        %v426 = vld [vmem:[%s2] sm:$0xf]
        %v428 = vlaneseq
        %v429 = vshrl.u32 %v428, 7
        %v430 = vsub.s32 0, %v429
        %v431 = vrot.slane %v426, %v430
        %v432 = vlaneseq
        %v433 = vshrl.u32 %v432, 7
        %v434 = vsub.s32 1, %v433
        %v435 = vrot.slane %v426, %v434
        %v436 = vlaneseq
        %v437 = vshrl.u32 %v436, 7
        %v438 = vsub.s32 2, %v437
        %v439 = vrot.slane %v426, %v438
        %v440 = vlaneseq
        %v441 = vshrl.u32 %v440, 7
        %v442 = vsub.s32 3, %v441
        %v443 = vrot.slane %v426, %v442
        %v576 = vunpack.c.l.b16 %v298
        %v577 = vunpack.c.h.b16 %v298
        %v578 = vunpack.c.l.b16 %v299
        %v579 = vunpack.c.h.b16 %v299
        %v580 = vunpack.c.l.b16 %v300
        %v581 = vunpack.c.h.b16 %v300
        %v582 = vunpack.c.l.b16 %v301
        %v583 = vunpack.c.h.b16 %v301
        %v584 = vunpack.c.l.b16 %v302
        %v585 = vunpack.c.h.b16 %v302
        %v586 = vunpack.c.l.b16 %v303
        %v587 = vunpack.c.h.b16 %v303
        %v588 = vunpack.c.l.b16 %v304
        %v589 = vunpack.c.h.b16 %v304
        %v590 = vunpack.c.l.b16 %v305
        %v591 = vunpack.c.h.b16 %v305
        %v592 = vunpack.c.l.b16 %v306
        %v593 = vunpack.c.h.b16 %v306
        %v594 = vunpack.c.l.b16 %v307
        %v595 = vunpack.c.h.b16 %v307
        %v596 = vunpack.c.l.b16 %v308
        %v597 = vunpack.c.h.b16 %v308
        %v598 = vunpack.c.l.b16 %v309
        %v599 = vunpack.c.h.b16 %v309
        %v600 = vunpack.c.l.b16 %v310
        %v601 = vunpack.c.h.b16 %v310
        %v602 = vunpack.c.l.b16 %v311
        %v603 = vunpack.c.h.b16 %v311
        %v604 = vunpack.c.l.b16 %v312
        %v605 = vunpack.c.h.b16 %v312
        %v606 = vunpack.c.l.b16 %v313
        %v607 = vunpack.c.h.b16 %v313
        %v608 = vunpack.c.l.b16 %v314
        %v609 = vunpack.c.h.b16 %v314
        %v610 = vunpack.c.l.b16 %v315
        %v611 = vunpack.c.h.b16 %v315
        %v612 = vunpack.c.l.b16 %v316
        %v613 = vunpack.c.h.b16 %v316
        %v614 = vunpack.c.l.b16 %v317
        %v615 = vunpack.c.h.b16 %v317
        %v616 = vunpack.c.l.b16 %v318
        %v617 = vunpack.c.h.b16 %v318
        %v618 = vunpack.c.l.b16 %v319
        %v619 = vunpack.c.h.b16 %v319
        %v620 = vunpack.c.l.b16 %v320
        %v621 = vunpack.c.h.b16 %v320
        %v622 = vunpack.c.l.b16 %v321
        %v623 = vunpack.c.h.b16 %v321
        %v624 = vunpack.c.l.b16 %v322
        %v625 = vunpack.c.h.b16 %v322
        %v626 = vunpack.c.l.b16 %v323
        %v627 = vunpack.c.h.b16 %v323
        %v628 = vunpack.c.l.b16 %v324
        %v629 = vunpack.c.h.b16 %v324
        %v630 = vunpack.c.l.b16 %v325
        %v631 = vunpack.c.h.b16 %v325
        %v632 = vunpack.c.l.b16 %v326
        %v633 = vunpack.c.h.b16 %v326
        %v634 = vunpack.c.l.b16 %v327
        %v635 = vunpack.c.h.b16 %v327
        %v636 = vunpack.c.l.b16 %v328
        %v637 = vunpack.c.h.b16 %v328
        %v638 = vunpack.c.l.b16 %v329
        %v639 = vunpack.c.h.b16 %v329
        %v640 = vunpack.c.l.b16 %v330
        %v641 = vunpack.c.h.b16 %v330
        %v642 = vunpack.c.l.b16 %v331
        %v643 = vunpack.c.h.b16 %v331
        %v644 = vunpack.c.l.b16 %v332
        %v645 = vunpack.c.h.b16 %v332
        %v646 = vunpack.c.l.b16 %v333
        %v647 = vunpack.c.h.b16 %v333
        %v648 = vunpack.c.l.b16 %v334
        %v649 = vunpack.c.h.b16 %v334
        %v650 = vunpack.c.l.b16 %v335
        %v651 = vunpack.c.h.b16 %v335
        %v652 = vunpack.c.l.b16 %v336
        %v653 = vunpack.c.h.b16 %v336
        %v654 = vunpack.c.l.b16 %v337
        %v655 = vunpack.c.h.b16 %v337
        %v656 = vunpack.c.l.b16 %v338
        %v657 = vunpack.c.h.b16 %v338
        %v658 = vunpack.c.l.b16 %v339
        %v659 = vunpack.c.h.b16 %v339
        %v660 = vunpack.c.l.b16 %v340
        %v661 = vunpack.c.h.b16 %v340
        %v662 = vunpack.c.l.b16 %v341
        %v663 = vunpack.c.h.b16 %v341
        %v664 = vunpack.c.l.b16 %v342
        %v665 = vunpack.c.h.b16 %v342
        %v666 = vunpack.c.l.b16 %v343
        %v667 = vunpack.c.h.b16 %v343
        %v668 = vunpack.c.l.b16 %v344
        %v669 = vunpack.c.h.b16 %v344
        %v670 = vunpack.c.l.b16 %v345
        %v671 = vunpack.c.h.b16 %v345
        %v672 = vunpack.c.l.b16 %v346
        %v673 = vunpack.c.h.b16 %v346
        %v674 = vunpack.c.l.b16 %v347
        %v675 = vunpack.c.h.b16 %v347
        %v676 = vunpack.c.l.b16 %v348
        %v677 = vunpack.c.h.b16 %v348
        %v678 = vunpack.c.l.b16 %v349
        %v679 = vunpack.c.h.b16 %v349
        %v680 = vunpack.c.l.b16 %v350
        %v681 = vunpack.c.h.b16 %v350
        %v682 = vunpack.c.l.b16 %v351
        %v683 = vunpack.c.h.b16 %v351
        %v684 = vunpack.c.l.b16 %v352
        %v685 = vunpack.c.h.b16 %v352
        %v686 = vunpack.c.l.b16 %v353
        %v687 = vunpack.c.h.b16 %v353
        %v688 = vunpack.c.l.b16 %v354
        %v689 = vunpack.c.h.b16 %v354
        %v690 = vunpack.c.l.b16 %v355
        %v691 = vunpack.c.h.b16 %v355
        %v692 = vunpack.c.l.b16 %v356
        %v693 = vunpack.c.h.b16 %v356
        %v694 = vunpack.c.l.b16 %v357
        %v695 = vunpack.c.h.b16 %v357
        %v696 = vunpack.c.l.b16 %v358
        %v697 = vunpack.c.h.b16 %v358
        %v698 = vunpack.c.l.b16 %v359
        %v699 = vunpack.c.h.b16 %v359
        %v700 = vunpack.c.l.b16 %v360
        %v701 = vunpack.c.h.b16 %v360
        %v702 = vunpack.c.l.b16 %v361
        %v703 = vunpack.c.h.b16 %v361
        %v704 = vunpack.c.l.b16 %v362
        %v705 = vunpack.c.h.b16 %v362
        %v706 = vunpack.c.l.b16 %v363
        %v707 = vunpack.c.h.b16 %v363
        %v708 = vunpack.c.l.b16 %v364
        %v709 = vunpack.c.h.b16 %v364
        %v710 = vunpack.c.l.b16 %v365
        %v711 = vunpack.c.h.b16 %v365
        %v712 = vunpack.c.l.b16 %v366
        %v713 = vunpack.c.h.b16 %v366
        %v714 = vunpack.c.l.b16 %v367
        %v715 = vunpack.c.h.b16 %v367
        %v716 = vunpack.c.l.b16 %v368
        %v717 = vunpack.c.h.b16 %v368
        %v718 = vunpack.c.l.b16 %v369
        %v719 = vunpack.c.h.b16 %v369
        %v720 = vunpack.c.l.b16 %v370
        %v721 = vunpack.c.h.b16 %v370
        %v722 = vunpack.c.l.b16 %v371
        %v723 = vunpack.c.h.b16 %v371
        %v724 = vunpack.c.l.b16 %v372
        %v725 = vunpack.c.h.b16 %v372
        %v726 = vunpack.c.l.b16 %v373
        %v727 = vunpack.c.h.b16 %v373
        %v728 = vunpack.c.l.b16 %v374
        %v729 = vunpack.c.h.b16 %v374
        %v730 = vunpack.c.l.b16 %v375
        %v731 = vunpack.c.h.b16 %v375
        %v732 = vunpack.c.l.b16 %v376
        %v733 = vunpack.c.h.b16 %v376
        %v734 = vunpack.c.l.b16 %v377
        %v735 = vunpack.c.h.b16 %v377
        %v736 = vunpack.c.l.b16 %v378
        %v737 = vunpack.c.h.b16 %v378
        %v738 = vunpack.c.l.b16 %v379
        %v739 = vunpack.c.h.b16 %v379
        %v740 = vunpack.c.l.b16 %v380
        %v741 = vunpack.c.h.b16 %v380
        %v742 = vunpack.c.l.b16 %v381
        %v743 = vunpack.c.h.b16 %v381
        %v744 = vunpack.c.l.b16 %v382
        %v745 = vunpack.c.h.b16 %v382
        %v746 = vunpack.c.l.b16 %v383
        %v747 = vunpack.c.h.b16 %v383
        %v748 = vunpack.c.l.b16 %v384
        %v749 = vunpack.c.h.b16 %v384
        %v750 = vunpack.c.l.b16 %v385
        %v751 = vunpack.c.h.b16 %v385
        %v752 = vunpack.c.l.b16 %v386
        %v753 = vunpack.c.h.b16 %v386
        %v754 = vunpack.c.l.b16 %v387
        %v755 = vunpack.c.h.b16 %v387
        %v756 = vunpack.c.l.b16 %v388
        %v757 = vunpack.c.h.b16 %v388
        %v758 = vunpack.c.l.b16 %v389
        %v759 = vunpack.c.h.b16 %v389
        %v760 = vunpack.c.l.b16 %v390
        %v761 = vunpack.c.h.b16 %v390
        %v762 = vunpack.c.l.b16 %v391
        %v763 = vunpack.c.h.b16 %v391
        %v764 = vunpack.c.l.b16 %v392
        %v765 = vunpack.c.h.b16 %v392
        %v766 = vunpack.c.l.b16 %v393
        %v767 = vunpack.c.h.b16 %v393
        %v768 = vunpack.c.l.b16 %v394
        %v769 = vunpack.c.h.b16 %v394
        %v770 = vunpack.c.l.b16 %v395
        %v771 = vunpack.c.h.b16 %v395
        %v772 = vunpack.c.l.b16 %v396
        %v773 = vunpack.c.h.b16 %v396
        %v774 = vunpack.c.l.b16 %v397
        %v775 = vunpack.c.h.b16 %v397
        %v776 = vunpack.c.l.b16 %v398
        %v777 = vunpack.c.h.b16 %v398
        %v778 = vunpack.c.l.b16 %v399
        %v779 = vunpack.c.h.b16 %v399
        %v780 = vunpack.c.l.b16 %v400
        %v781 = vunpack.c.h.b16 %v400
        %v782 = vunpack.c.l.b16 %v401
        %v783 = vunpack.c.h.b16 %v401
        %v784 = vunpack.c.l.b16 %v402
        %v785 = vunpack.c.h.b16 %v402
        %v786 = vunpack.c.l.b16 %v403
        %v787 = vunpack.c.h.b16 %v403
        %v788 = vunpack.c.l.b16 %v404
        %v789 = vunpack.c.h.b16 %v404
        %v790 = vunpack.c.l.b16 %v405
        %v791 = vunpack.c.h.b16 %v405
        %v792 = vunpack.c.l.b16 %v406
        %v793 = vunpack.c.h.b16 %v406
        %v794 = vunpack.c.l.b16 %v407
        %v795 = vunpack.c.h.b16 %v407
        %v796 = vunpack.c.l.b16 %v408
        %v797 = vunpack.c.h.b16 %v408
        %v798 = vunpack.c.l.b16 %v409
        %v799 = vunpack.c.h.b16 %v409
        %v800 = vunpack.c.l.b16 %v410
        %v801 = vunpack.c.h.b16 %v410
        %v802 = vunpack.c.l.b16 %v411
        %v803 = vunpack.c.h.b16 %v411
        %v804 = vunpack.c.l.b16 %v412
        %v805 = vunpack.c.h.b16 %v412
        %v806 = vunpack.c.l.b16 %v413
        %v807 = vunpack.c.h.b16 %v413
        %v808 = vunpack.c.l.b16 %v414
        %v809 = vunpack.c.h.b16 %v414
        %v810 = vunpack.c.l.b16 %v415
        %v811 = vunpack.c.h.b16 %v415
        %v812 = vunpack.c.l.b16 %v416
        %v813 = vunpack.c.h.b16 %v416
        %v814 = vunpack.c.l.b16 %v417
        %v815 = vunpack.c.h.b16 %v417
        %v816 = vunpack.c.l.b16 %v418
        %v817 = vunpack.c.h.b16 %v418
        %v818 = vunpack.c.l.b16 %v419
        %v819 = vunpack.c.h.b16 %v419
        %v820 = vunpack.c.l.b16 %v420
        %v821 = vunpack.c.h.b16 %v420
        %v822 = vunpack.c.l.b16 %v421
        %v823 = vunpack.c.h.b16 %v421
        %v824 = vunpack.c.l.b16 %v422
        %v825 = vunpack.c.h.b16 %v422
        %v826 = vunpack.c.l.b16 %v423
        %v827 = vunpack.c.h.b16 %v423
        %v828 = vunpack.c.l.b16 %v424
        %v829 = vunpack.c.h.b16 %v424
        %v830 = vunpack.c.l.b16 %v425
        %v831 = vunpack.c.h.b16 %v425
        %v832 = vpack.c.b16 %v580, %v576
        %v833 = vpack.c.b16 %v581, %v577
        %v834 = vpack.c.b16 %v582, %v578
        %v835 = vpack.c.b16 %v583, %v579
        %v836 = vpack.c.b16 %v588, %v584
        %v837 = vpack.c.b16 %v589, %v585
        %v838 = vpack.c.b16 %v590, %v586
        %v839 = vpack.c.b16 %v591, %v587
        %v840 = vpack.c.b16 %v596, %v592
        %v841 = vpack.c.b16 %v597, %v593
        %v842 = vpack.c.b16 %v598, %v594
        %v843 = vpack.c.b16 %v599, %v595
        %v844 = vpack.c.b16 %v604, %v600
        %v845 = vpack.c.b16 %v605, %v601
        %v846 = vpack.c.b16 %v606, %v602
        %v847 = vpack.c.b16 %v607, %v603
        %v848 = vpack.c.b16 %v612, %v608
        %v849 = vpack.c.b16 %v613, %v609
        %v850 = vpack.c.b16 %v614, %v610
        %v851 = vpack.c.b16 %v615, %v611
        %v852 = vpack.c.b16 %v620, %v616
        %v853 = vpack.c.b16 %v621, %v617
        %v854 = vpack.c.b16 %v622, %v618
        %v855 = vpack.c.b16 %v623, %v619
        %v856 = vpack.c.b16 %v628, %v624
        %v857 = vpack.c.b16 %v629, %v625
        %v858 = vpack.c.b16 %v630, %v626
        %v859 = vpack.c.b16 %v631, %v627
        %v860 = vpack.c.b16 %v636, %v632
        %v861 = vpack.c.b16 %v637, %v633
        %v862 = vpack.c.b16 %v638, %v634
        %v863 = vpack.c.b16 %v639, %v635
        %v864 = vpack.c.b16 %v644, %v640
        %v865 = vpack.c.b16 %v645, %v641
        %v866 = vpack.c.b16 %v646, %v642
        %v867 = vpack.c.b16 %v647, %v643
        %v868 = vpack.c.b16 %v652, %v648
        %v869 = vpack.c.b16 %v653, %v649
        %v870 = vpack.c.b16 %v654, %v650
        %v871 = vpack.c.b16 %v655, %v651
        %v872 = vpack.c.b16 %v660, %v656
        %v873 = vpack.c.b16 %v661, %v657
        %v874 = vpack.c.b16 %v662, %v658
        %v875 = vpack.c.b16 %v663, %v659
        %v876 = vpack.c.b16 %v668, %v664
        %v877 = vpack.c.b16 %v669, %v665
        %v878 = vpack.c.b16 %v670, %v666
        %v879 = vpack.c.b16 %v671, %v667
        %v880 = vpack.c.b16 %v676, %v672
        %v881 = vpack.c.b16 %v677, %v673
        %v882 = vpack.c.b16 %v678, %v674
        %v883 = vpack.c.b16 %v679, %v675
        %v884 = vpack.c.b16 %v684, %v680
        %v885 = vpack.c.b16 %v685, %v681
        %v886 = vpack.c.b16 %v686, %v682
        %v887 = vpack.c.b16 %v687, %v683
        %v888 = vpack.c.b16 %v692, %v688
        %v889 = vpack.c.b16 %v693, %v689
        %v890 = vpack.c.b16 %v694, %v690
        %v891 = vpack.c.b16 %v695, %v691
        %v892 = vpack.c.b16 %v700, %v696
        %v893 = vpack.c.b16 %v701, %v697
        %v894 = vpack.c.b16 %v702, %v698
        %v895 = vpack.c.b16 %v703, %v699
        %v896 = vpack.c.b16 %v708, %v704
        %v897 = vpack.c.b16 %v709, %v705
        %v898 = vpack.c.b16 %v710, %v706
        %v899 = vpack.c.b16 %v711, %v707
        %v900 = vpack.c.b16 %v716, %v712
        %v901 = vpack.c.b16 %v717, %v713
        %v902 = vpack.c.b16 %v718, %v714
        %v903 = vpack.c.b16 %v719, %v715
        %v904 = vpack.c.b16 %v724, %v720
        %v905 = vpack.c.b16 %v725, %v721
        %v906 = vpack.c.b16 %v726, %v722
        %v907 = vpack.c.b16 %v727, %v723
        %v908 = vpack.c.b16 %v732, %v728
        %v909 = vpack.c.b16 %v733, %v729
        %v910 = vpack.c.b16 %v734, %v730
        %v911 = vpack.c.b16 %v735, %v731
        %v912 = vpack.c.b16 %v740, %v736
        %v913 = vpack.c.b16 %v741, %v737
        %v914 = vpack.c.b16 %v742, %v738
        %v915 = vpack.c.b16 %v743, %v739
        %v916 = vpack.c.b16 %v748, %v744
        %v917 = vpack.c.b16 %v749, %v745
        %v918 = vpack.c.b16 %v750, %v746
        %v919 = vpack.c.b16 %v751, %v747
        %v920 = vpack.c.b16 %v756, %v752
        %v921 = vpack.c.b16 %v757, %v753
        %v922 = vpack.c.b16 %v758, %v754
        %v923 = vpack.c.b16 %v759, %v755
        %v924 = vpack.c.b16 %v764, %v760
        %v925 = vpack.c.b16 %v765, %v761
        %v926 = vpack.c.b16 %v766, %v762
        %v927 = vpack.c.b16 %v767, %v763
        %v928 = vpack.c.b16 %v772, %v768
        %v929 = vpack.c.b16 %v773, %v769
        %v930 = vpack.c.b16 %v774, %v770
        %v931 = vpack.c.b16 %v775, %v771
        %v932 = vpack.c.b16 %v780, %v776
        %v933 = vpack.c.b16 %v781, %v777
        %v934 = vpack.c.b16 %v782, %v778
        %v935 = vpack.c.b16 %v783, %v779
        %v936 = vpack.c.b16 %v788, %v784
        %v937 = vpack.c.b16 %v789, %v785
        %v938 = vpack.c.b16 %v790, %v786
        %v939 = vpack.c.b16 %v791, %v787
        %v940 = vpack.c.b16 %v796, %v792
        %v941 = vpack.c.b16 %v797, %v793
        %v942 = vpack.c.b16 %v798, %v794
        %v943 = vpack.c.b16 %v799, %v795
        %v944 = vpack.c.b16 %v804, %v800
        %v945 = vpack.c.b16 %v805, %v801
        %v946 = vpack.c.b16 %v806, %v802
        %v947 = vpack.c.b16 %v807, %v803
        %v948 = vpack.c.b16 %v812, %v808
        %v949 = vpack.c.b16 %v813, %v809
        %v950 = vpack.c.b16 %v814, %v810
        %v951 = vpack.c.b16 %v815, %v811
        %v952 = vpack.c.b16 %v820, %v816
        %v953 = vpack.c.b16 %v821, %v817
        %v954 = vpack.c.b16 %v822, %v818
        %v955 = vpack.c.b16 %v823, %v819
        %v956 = vpack.c.b16 %v828, %v824
        %v957 = vpack.c.b16 %v829, %v825
        %v958 = vpack.c.b16 %v830, %v826
        %v959 = vpack.c.b16 %v831, %v827
        %1088 = vmatprep.subr.bf16.mxu0 %v861
        %1089 = vmatpush1.bf16.msra.mxu0 %v860
        %1090 = vmatprep.subr.bf16.mxu0 %v857
        %1091 = vmatpush1.bf16.msra.mxu0 %v856
        %1092 = vmatprep.subr.bf16.mxu0 %v853
        %1093 = vmatpush1.bf16.msra.mxu0 %v852
        %1094 = vmatprep.subr.bf16.mxu0 %v849
        %1095 = vmatpush1.bf16.msra.mxu0 %v848
        %1096 = vmatprep.subr.bf16.mxu0 %v845
        %1097 = vmatpush1.bf16.msra.mxu0 %v844
        %1098 = vmatprep.subr.bf16.mxu0 %v841
        %1099 = vmatpush1.bf16.msra.mxu0 %v840
        %1100 = vmatprep.subr.bf16.mxu0 %v837
        %1101 = vmatpush1.bf16.msra.mxu0 %v836
        %1102 = vmatprep.subr.bf16.mxu0 %v833
        %1103 = vmatpush1.bf16.msra.mxu0 %v832
        %1104 = vmatprep.subr.bf16.mxu0 %v893
        %1105 = vmatpush2.bf16.msra.mxu0 %v892
        %1106 = vmatprep.subr.bf16.mxu0 %v889
        %1107 = vmatpush2.bf16.msra.mxu0 %v888
        %1108 = vmatprep.subr.bf16.mxu0 %v885
        %1109 = vmatpush2.bf16.msra.mxu0 %v884
        %1110 = vmatprep.subr.bf16.mxu0 %v881
        %1111 = vmatpush2.bf16.msra.mxu0 %v880
        %1112 = vmatprep.subr.bf16.mxu0 %v877
        %1113 = vmatpush2.bf16.msra.mxu0 %v876
        %1114 = vmatprep.subr.bf16.mxu0 %v873
        %1115 = vmatpush2.bf16.msra.mxu0 %v872
        %1116 = vmatprep.subr.bf16.mxu0 %v869
        %1117 = vmatpush2.bf16.msra.mxu0 %v868
        %1118 = vmatprep.subr.bf16.mxu0 %v865
        %1119 = vmatpush2.bf16.msra.mxu0 %v864
        %1120 = vmatprep.mubr.bf16.mxu0 %v295
        %1121 = vmatmul.mubr.bf16.gmra.mxu0 %v294
        %v1122 = vpop.f32.mrf.mxu0
        %v1123 = vadd.f32 %v431, %v1122
        %v1124 = vpop.f32.mrf.mxu0
        %v1125 = vadd.f32 %v435, %v1124
        %v1126 = vpop.f32.mrf.mxu0
        %v1127 = vadd.f32 %v431, %v1126
        %v1128 = vpop.f32.mrf.mxu0
        %v1129 = vadd.f32 %v435, %v1128
        %1130 = vdwg.mxu0
        %1131 = vmatprep.subr.bf16.mxu0 %v925
        %1132 = vmatpush1.bf16.msra.mxu0 %v924
        %1133 = vmatprep.subr.bf16.mxu0 %v921
        %1134 = vmatpush1.bf16.msra.mxu0 %v920
        %1135 = vmatprep.subr.bf16.mxu0 %v917
        %1136 = vmatpush1.bf16.msra.mxu0 %v916
        %1137 = vmatprep.subr.bf16.mxu0 %v913
        %1138 = vmatpush1.bf16.msra.mxu0 %v912
        %1139 = vmatprep.subr.bf16.mxu0 %v909
        %1140 = vmatpush1.bf16.msra.mxu0 %v908
        %1141 = vmatprep.subr.bf16.mxu0 %v905
        %1142 = vmatpush1.bf16.msra.mxu0 %v904
        %1143 = vmatprep.subr.bf16.mxu0 %v901
        %1144 = vmatpush1.bf16.msra.mxu0 %v900
        %1145 = vmatprep.subr.bf16.mxu0 %v897
        %1146 = vmatpush1.bf16.msra.mxu0 %v896
        %1147 = vmatprep.subr.bf16.mxu0 %v957
        %1148 = vmatpush2.bf16.msra.mxu0 %v956
        %1149 = vmatprep.subr.bf16.mxu0 %v953
        %1150 = vmatpush2.bf16.msra.mxu0 %v952
        %1151 = vmatprep.subr.bf16.mxu0 %v949
        %1152 = vmatpush2.bf16.msra.mxu0 %v948
        %1153 = vmatprep.subr.bf16.mxu0 %v945
        %1154 = vmatpush2.bf16.msra.mxu0 %v944
        %1155 = vmatprep.subr.bf16.mxu0 %v941
        %1156 = vmatpush2.bf16.msra.mxu0 %v940
        %1157 = vmatprep.subr.bf16.mxu0 %v937
        %1158 = vmatpush2.bf16.msra.mxu0 %v936
        %1159 = vmatprep.subr.bf16.mxu0 %v933
        %1160 = vmatpush2.bf16.msra.mxu0 %v932
        %1161 = vmatprep.subr.bf16.mxu0 %v929
        %1162 = vmatpush2.bf16.msra.mxu0 %v928
        %1163 = vmatprep.mubr.bf16.mxu0 %v297
        %1164 = vmatmul.mubr.bf16.gmra.mxu0 %v296
        %v1165 = vpop.f32.mrf.mxu0
        %v1166 = vadd.f32 %v1123, %v1165
        %v1167 = vpop.f32.mrf.mxu0
        %v1168 = vadd.f32 %v1125, %v1167
        %v1169 = vpop.f32.mrf.mxu0
        %v1170 = vadd.f32 %v1127, %v1169
        %v1171 = vpop.f32.mrf.mxu0
        %v1172 = vadd.f32 %v1129, %v1171
        %1173 = vdwg.mxu0
        %1174 = vmatprep.subr.bf16.mxu0 %v863
        %1175 = vmatpush1.bf16.msra.mxu0 %v862
        %1176 = vmatprep.subr.bf16.mxu0 %v859
        %1177 = vmatpush1.bf16.msra.mxu0 %v858
        %1178 = vmatprep.subr.bf16.mxu0 %v855
        %1179 = vmatpush1.bf16.msra.mxu0 %v854
        %1180 = vmatprep.subr.bf16.mxu0 %v851
        %1181 = vmatpush1.bf16.msra.mxu0 %v850
        %1182 = vmatprep.subr.bf16.mxu0 %v847
        %1183 = vmatpush1.bf16.msra.mxu0 %v846
        %1184 = vmatprep.subr.bf16.mxu0 %v843
        %1185 = vmatpush1.bf16.msra.mxu0 %v842
        %1186 = vmatprep.subr.bf16.mxu0 %v839
        %1187 = vmatpush1.bf16.msra.mxu0 %v838
        %1188 = vmatprep.subr.bf16.mxu0 %v835
        %1189 = vmatpush1.bf16.msra.mxu0 %v834
        %1190 = vmatprep.subr.bf16.mxu0 %v895
        %1191 = vmatpush2.bf16.msra.mxu0 %v894
        %1192 = vmatprep.subr.bf16.mxu0 %v891
        %1193 = vmatpush2.bf16.msra.mxu0 %v890
        %1194 = vmatprep.subr.bf16.mxu0 %v887
        %1195 = vmatpush2.bf16.msra.mxu0 %v886
        %1196 = vmatprep.subr.bf16.mxu0 %v883
        %1197 = vmatpush2.bf16.msra.mxu0 %v882
        %1198 = vmatprep.subr.bf16.mxu0 %v879
        %1199 = vmatpush2.bf16.msra.mxu0 %v878
        %1200 = vmatprep.subr.bf16.mxu0 %v875
        %1201 = vmatpush2.bf16.msra.mxu0 %v874
        %1202 = vmatprep.subr.bf16.mxu0 %v871
        %1203 = vmatpush2.bf16.msra.mxu0 %v870
        %1204 = vmatprep.subr.bf16.mxu0 %v867
        %1205 = vmatpush2.bf16.msra.mxu0 %v866
        %1206 = vmatprep.mubr.bf16.mxu0 %v295
        %1207 = vmatmul.mubr.bf16.gmra.mxu0 %v294
        %v1208 = vpop.f32.mrf.mxu0
        %v1209 = vadd.f32 %v439, %v1208
        %v1210 = vpop.f32.mrf.mxu0
        %v1211 = vadd.f32 %v443, %v1210
        %v1212 = vpop.f32.mrf.mxu0
        %v1213 = vadd.f32 %v439, %v1212
        %v1214 = vpop.f32.mrf.mxu0
        %v1215 = vadd.f32 %v443, %v1214
        %1216 = vdwg.mxu0
        %1217 = vmatprep.subr.bf16.mxu0 %v927
        %1218 = vmatpush1.bf16.msra.mxu0 %v926
        %1219 = vmatprep.subr.bf16.mxu0 %v923
        %1220 = vmatpush1.bf16.msra.mxu0 %v922
        %1221 = vmatprep.subr.bf16.mxu0 %v919
        %1222 = vmatpush1.bf16.msra.mxu0 %v918
        %1223 = vmatprep.subr.bf16.mxu0 %v915
        %1224 = vmatpush1.bf16.msra.mxu0 %v914
        %1225 = vmatprep.subr.bf16.mxu0 %v911
        %1226 = vmatpush1.bf16.msra.mxu0 %v910
        %1227 = vmatprep.subr.bf16.mxu0 %v907
        %1228 = vmatpush1.bf16.msra.mxu0 %v906
        %1229 = vmatprep.subr.bf16.mxu0 %v903
        %1230 = vmatpush1.bf16.msra.mxu0 %v902
        %1231 = vmatprep.subr.bf16.mxu0 %v899
        %1232 = vmatpush1.bf16.msra.mxu0 %v898
        %1233 = vmatprep.subr.bf16.mxu0 %v959
        %1234 = vmatpush2.bf16.msra.mxu0 %v958
        %1235 = vmatprep.subr.bf16.mxu0 %v955
        %1236 = vmatpush2.bf16.msra.mxu0 %v954
        %1237 = vmatprep.subr.bf16.mxu0 %v951
        %1238 = vmatpush2.bf16.msra.mxu0 %v950
        %1239 = vmatprep.subr.bf16.mxu0 %v947
        %1240 = vmatpush2.bf16.msra.mxu0 %v946
        %1241 = vmatprep.subr.bf16.mxu0 %v943
        %1242 = vmatpush2.bf16.msra.mxu0 %v942
        %1243 = vmatprep.subr.bf16.mxu0 %v939
        %1244 = vmatpush2.bf16.msra.mxu0 %v938
        %1245 = vmatprep.subr.bf16.mxu0 %v935
        %1246 = vmatpush2.bf16.msra.mxu0 %v934
        %1247 = vmatprep.subr.bf16.mxu0 %v931
        %1248 = vmatpush2.bf16.msra.mxu0 %v930
        %1249 = vmatprep.mubr.bf16.mxu0 %v297
        %1250 = vmatmul.mubr.bf16.gmra.mxu0 %v296
        %v1251 = vpop.f32.mrf.mxu0
        %v1252 = vadd.f32 %v1209, %v1251
        %v1253 = vpop.f32.mrf.mxu0
        %v1254 = vadd.f32 %v1211, %v1253
        %v1255 = vpop.f32.mrf.mxu0
        %v1256 = vadd.f32 %v1213, %v1255
        %v1257 = vpop.f32.mrf.mxu0
        %v1258 = vadd.f32 %v1215, %v1257
        %1259 = vdwg.mxu0
        %v1260 = vmax.f32 %v1166, 0.0
        %v1261 = vmax.f32 %v1168, 0.0
        %v1262 = vmax.f32 %v1252, 0.0
        %v1263 = vmax.f32 %v1254, 0.0
        %v1264 = vmax.f32 %v1170, 0.0
        %v1265 = vmax.f32 %v1172, 0.0
        %v1266 = vmax.f32 %v1256, 0.0
        %v1267 = vmax.f32 %v1258, 0.0
        %v1268 = vld [vmem:[#allocation7] sm:$0xf]
        %v1269 = vmul.f32 %v1268, 20.0
        %v1271 = vlaneseq
        %v1272 = vshrl.u32 %v1271, 7
        %v1273 = vsub.s32 0, %v1272
        %v1274 = vrot.slane %v1269, %v1273
        %v1275 = vlaneseq
        %v1276 = vshrl.u32 %v1275, 7
        %v1277 = vsub.s32 1, %v1276
        %v1278 = vrot.slane %v1269, %v1277
        %v1279 = vlaneseq
        %v1280 = vshrl.u32 %v1279, 7
        %v1281 = vsub.s32 2, %v1280
        %v1282 = vrot.slane %v1269, %v1281
        %v1283 = vlaneseq
        %v1284 = vshrl.u32 %v1283, 7
        %v1285 = vsub.s32 3, %v1284
        %v1286 = vrot.slane %v1269, %v1285
        %v1291 = vmul.f32 %v1260, %v1274
        %v1292 = vmul.f32 %v1261, %v1278
        %v1293 = vmul.f32 %v1262, %v1282
        %v1294 = vmul.f32 %v1263, %v1286
        %v1295 = vmul.f32 %v1264, %v1274
        %v1296 = vmul.f32 %v1265, %v1278
        %v1297 = vmul.f32 %v1266, %v1282
        %v1298 = vmul.f32 %v1267, %v1286
        %v1299 = vadd.f32 %v1291, %v1292
        %v1300 = vadd.f32 %v1299, %v1293
        %v1301 = vadd.f32 %v1300, %v1294
        %1302 = vadd.xlane.f32.xlu0 %v1301
        %v1303 = vpop.xlane.xlu0 %1302
        %v1304 = vadd.f32 %v1295, %v1296
        %v1305 = vadd.f32 %v1304, %v1297
        %v1306 = vadd.f32 %v1305, %v1298
        %1307 = vadd.xlane.f32.xlu0 %v1306
        %v1308 = vpop.xlane.xlu0 %1307
        %s1309 = sld [smem:[#allocation2]]
        %v1310 = vstv %s1309
        %v1311 = vadd.f32 %v1303, %v1310
        %v1312 = vadd.f32 %v1308, %v1310
        %v1313 = vxor.u32 %v1311, 2147483648
        %v1314 = vxor.u32 %v1312, 2147483648
        %v1315 = vmul.f32 %v1313, 1.442695
        %v1316 = vpow.pop %v1315
        %v1317 = vmul.f32 %v1314, 1.442695
        %v1318 = vpow.pop %v1317
        %v1319 = vadd.f32 %v1316, 1.0
        %v1320 = vadd.f32 %v1318, 1.0
        %v1321 = vrcp.pop %v1319
        %v1322 = vmul.f32 1.0, %v1321
        %v1323 = vrcp.pop %v1320
        %v1324 = vmul.f32 1.0, %v1323
        %vm1325 = vcmask 7168
        %1326 = vst.msk [vmem:[%s274] sm:$0xff] %vm1325, %v1322
        %1327 = vst.msk [vmem:[%s274 + $0x8] sm:$0xff] %vm1325, %v1324
        %s1328 = sand.u32 %s139, 1
        %s1329 = sand.u32 %s139, 1
        %s1330 = smul.addr %s1329, 16
        %s1331 = scalar_lea.vmem [#allocation8], %s1330
        // Predicated region
        $region53: #{tpu_custom_call.1} parent=39 // pred_check
          %p1332 = pneg %p149
        $region54: #{tpu_custom_call.1} parent=39 // pred_check_branch
          %1334 = sbr.rel (%p1332) target = $region56
        $region55: #{tpu_custom_call.1} parent=39 // pred_region
          %s1335 = smul.u32 2, %s21
          %s1336 = ssub.s32 3, %s1335
          %p1337 = scmp.lt.s32.totalorder %s1336, 2
          %s1338 = scalar_select %p1337, %s1336, 2
          %s1339 = smul.u32 128, %s1338
          %p1340 = scmp.ne.s32.totalorder 0, %s1339
          %s1341 = smul.addr %s1335, 8
          %s1342 = scalar_lea.vmem %s5, %s1341
          // Predicated region
          $region57: #{tpu_custom_call.1} parent=55 // pred_check
            %p1343 = pneg %p1340
          $region58: #{tpu_custom_call.1} parent=55 // pred_check_branch
            %1345 = sbr.rel (%p1343) target = $region60
          $region59: #{tpu_custom_call.1} parent=55 // pred_region
            // Predicated region
            $region61: #{tpu_custom_call.1} parent=59 // pred_check
              _
            $region62: #{tpu_custom_call.1} parent=59 // pred_check_branch
              %1347 = sbr.rel (0) target = $region64
            $region63: #{tpu_custom_call.1} parent=59 // pred_region
              // Predicated region
              $region83: #{tpu_custom_call.1} parent=63 // pred_check
                _
              $region84: #{tpu_custom_call.1} parent=63 // pred_check_branch
                %1399 = sbr.rel (0) target = $region86
              $region85: #{tpu_custom_call.1} parent=63 // pred_region
                %s1400 = sshrl.u32 %s1338, 1
                // While loop
                $region87: #{tpu_custom_call.1} parent=85 // loop_pre_header
                  _
                $region88: #{tpu_custom_call.1} parent=85 // loop_header
                  %s1402 = sphi 0, %s1404
                  %p1403 = scmp.ge.s32.totalorder %s1402, %s1400
                  %s1407 = sphi 0, %s1416
                  %s1408 = sphi %s1331, %s1419
                  %s1409 = sphi %s1342, %s1420
                $region89: #{tpu_custom_call.1} parent=85 // loop_header_branch
                  %1406 = sbr.rel (%p1403) target = $region93
                $region90: #{tpu_custom_call.1} parent=85 // loop_body
                  %v1410 = vld [vmem:[%s1408] sm:$0xff]
                  %1411 = vst [vmem:[%s1409] sm:$0xff] %v1410
                  %v1412 = vld [vmem:[%s1408 + $0x8] sm:$0xff]
                  %1413 = vst [vmem:[%s1409 + $0x8] sm:$0xff] %v1412
                  %s1414 = sadd.s32 1, %s1407
                  %p1415 = scmp.ge.s32.totalorder %s1414, %s1400
                  %s1416 = scalar_select %p1415, 0, %s1414
                  %s1417 = smul.u32 %s1416, 16
                  %s1418 = smul.u32 %s1416, 16
                  %s1419 = scalar_lea.vmem %s1331, %s1417 [#allocation8]
                  %s1420 = scalar_lea.vmem %s1342, %s1418
                $region91: #{tpu_custom_call.1} parent=85 // loop_footer
                  %s1404 = sadd.s32 %s1402, 1
                $region92: #{tpu_custom_call.1} parent=85 // loop_footer_branch
                  %1401 = sbr.rel target = $region88
                $region93: #{tpu_custom_call.1} parent=85 // loop_exit
                  _
                %s1421 = sshrl.u32 %s1338, 1
                %s1422 = sand.u32 %s1338, 1
                %s1423 = smul.u32 %s1421, 2
                %s1424 = smul.u32 8, %s1423
                %s1425 = scalar_lea.vmem %s1331, %s1424 [#allocation8]
                %s1426 = smul.u32 8, %s1423
                %s1427 = scalar_lea.vmem %s1342, %s1426
                // While loop
                $region94: #{tpu_custom_call.1} parent=85 // loop_pre_header
                  _
                $region95: #{tpu_custom_call.1} parent=85 // loop_header
                  %s1429 = sphi 0, %s1431
                  %p1430 = scmp.ge.s32.totalorder %s1429, %s1422
                  %s1434 = sphi 0, %s1441
                  %s1435 = sphi %s1425, %s1444
                  %s1436 = sphi %s1427, %s1445
                $region96: #{tpu_custom_call.1} parent=85 // loop_header_branch
                  %1433 = sbr.rel (%p1430) target = $region100
                $region97: #{tpu_custom_call.1} parent=85 // loop_body
                  %v1437 = vld [vmem:[%s1435] sm:$0xff]
                  %1438 = vst [vmem:[%s1436] sm:$0xff] %v1437
                  %s1439 = sadd.s32 1, %s1434
                  %p1440 = scmp.ge.s32.totalorder %s1439, %s1422
                  %s1441 = scalar_select %p1440, 0, %s1439
                  %s1442 = smul.u32 %s1441, 8
                  %s1443 = smul.u32 %s1441, 8
                  %s1444 = scalar_lea.vmem %s1425, %s1442 [#allocation8]
                  %s1445 = scalar_lea.vmem %s1427, %s1443
                $region98: #{tpu_custom_call.1} parent=85 // loop_footer
                  %s1431 = sadd.s32 %s1429, 1
                $region99: #{tpu_custom_call.1} parent=85 // loop_footer_branch
                  %1428 = sbr.rel target = $region95
                $region100: #{tpu_custom_call.1} parent=85 // loop_exit
                  _
              $region86: #{tpu_custom_call.1} parent=63 // pred_fallthru
                _
              // Predicated region
              $region101: #{tpu_custom_call.1} parent=63 // pred_check
                _
              $region102: #{tpu_custom_call.1} parent=63 // pred_check_branch
                %1447 = sbr.rel target = $region104
              $region103: #{tpu_custom_call.1} parent=63 // pred_region
                _
              $region104: #{tpu_custom_call.1} parent=63 // pred_fallthru
                _
            $region64: #{tpu_custom_call.1} parent=59 // pred_fallthru
              _
            // Predicated region
            $region65: #{tpu_custom_call.1} parent=59 // pred_check
              _
            $region66: #{tpu_custom_call.1} parent=59 // pred_check_branch
              %1349 = sbr.rel target = $region68
            $region67: #{tpu_custom_call.1} parent=59 // pred_region
              %s1351 = ssub.s32 256, 1
              %s1352 = sshrl.u32 %s1338, 1
              // While loop
              $region69: #{tpu_custom_call.1} parent=67 // loop_pre_header
                _
              $region70: #{tpu_custom_call.1} parent=67 // loop_header
                %s1354 = sphi 0, %s1356
                %p1355 = scmp.ge.s32.totalorder %s1354, %s1352
                %s1359 = sphi 0, %s1368
                %s1360 = sphi %s1331, %s1371
                %s1361 = sphi %s1342, %s1372
              $region71: #{tpu_custom_call.1} parent=67 // loop_header_branch
                %1358 = sbr.rel (%p1355) target = $region75
              $region72: #{tpu_custom_call.1} parent=67 // loop_body
                %v1362 = vld [vmem:[%s1360] sm:%s1351]
                %1363 = vst [vmem:[%s1361] sm:%s1351] %v1362
                %v1364 = vld [vmem:[%s1360 + $0x8] sm:%s1351]
                %1365 = vst [vmem:[%s1361 + $0x8] sm:%s1351] %v1364
                %s1366 = sadd.s32 1, %s1359
                %p1367 = scmp.ge.s32.totalorder %s1366, %s1352
                %s1368 = scalar_select %p1367, 0, %s1366
                %s1369 = smul.u32 %s1368, 16
                %s1370 = smul.u32 %s1368, 16
                %s1371 = scalar_lea.vmem %s1331, %s1369 [#allocation8]
                %s1372 = scalar_lea.vmem %s1342, %s1370
              $region73: #{tpu_custom_call.1} parent=67 // loop_footer
                %s1356 = sadd.s32 %s1354, 1
              $region74: #{tpu_custom_call.1} parent=67 // loop_footer_branch
                %1353 = sbr.rel target = $region70
              $region75: #{tpu_custom_call.1} parent=67 // loop_exit
                _
              %s1373 = sshrl.u32 %s1338, 1
              %s1374 = sand.u32 %s1338, 1
              %s1375 = smul.u32 %s1373, 2
              %s1376 = smul.u32 8, %s1375
              %s1377 = scalar_lea.vmem %s1331, %s1376 [#allocation8]
              %s1378 = smul.u32 8, %s1375
              %s1379 = scalar_lea.vmem %s1342, %s1378
              // While loop
              $region76: #{tpu_custom_call.1} parent=67 // loop_pre_header
                _
              $region77: #{tpu_custom_call.1} parent=67 // loop_header
                %s1381 = sphi 0, %s1383
                %p1382 = scmp.ge.s32.totalorder %s1381, %s1374
                %s1386 = sphi 0, %s1393
                %s1387 = sphi %s1377, %s1396
                %s1388 = sphi %s1379, %s1397
              $region78: #{tpu_custom_call.1} parent=67 // loop_header_branch
                %1385 = sbr.rel (%p1382) target = $region82
              $region79: #{tpu_custom_call.1} parent=67 // loop_body
                %v1389 = vld [vmem:[%s1387] sm:%s1351]
                %1390 = vst [vmem:[%s1388] sm:%s1351] %v1389
                %s1391 = sadd.s32 1, %s1386
                %p1392 = scmp.ge.s32.totalorder %s1391, %s1374
                %s1393 = scalar_select %p1392, 0, %s1391
                %s1394 = smul.u32 %s1393, 8
                %s1395 = smul.u32 %s1393, 8
                %s1396 = scalar_lea.vmem %s1377, %s1394 [#allocation8]
                %s1397 = scalar_lea.vmem %s1379, %s1395
              $region80: #{tpu_custom_call.1} parent=67 // loop_footer
                %s1383 = sadd.s32 %s1381, 1
              $region81: #{tpu_custom_call.1} parent=67 // loop_footer_branch
                %1380 = sbr.rel target = $region77
              $region82: #{tpu_custom_call.1} parent=67 // loop_exit
                _
            $region68: #{tpu_custom_call.1} parent=59 // pred_fallthru
              _
          $region60: #{tpu_custom_call.1} parent=55 // pred_fallthru
            _
          %1448 = vnop
        $region56: #{tpu_custom_call.1} parent=39 // pred_fallthru
          _
      $region40: #{tpu_custom_call.1} parent=5 // pred_fallthru
        _
      %p1449 = scmp.le.s32.totalorder 2, %s16
      // Predicated region
      $region105: #{tpu_custom_call.1} parent=5 // pred_check
        %p1450 = pneg %p1449
      $region106: #{tpu_custom_call.1} parent=5 // pred_check_branch
        %1452 = sbr.rel (%p1450) target = $region108
      $region107: #{tpu_custom_call.1} parent=5 // pred_region
        %s1453 = ssub.s32 %s16, 2
        // Predicated region
        $region109: #{tpu_custom_call.1} parent=107 // pred_check
          %p1454 = pneg %p155
        $region110: #{tpu_custom_call.1} parent=107 // pred_check_branch
          %1456 = sbr.rel (%p1454) target = $region112
        $region111: #{tpu_custom_call.1} parent=107 // pred_region
          %s1457 = sand.u32 %s140, 1
          %s1458 = sand.u32 %s140, 1
          %s1459 = smul.addr %s1458, 16
          %s1460 = scalar_lea.vmem [#allocation8], %s1459
        $region112: #{tpu_custom_call.1} parent=107 // pred_fallthru
          _
      $region108: #{tpu_custom_call.1} parent=5 // pred_fallthru
        _
    $region6: #{tpu_custom_call.1} parent=1 // loop_footer
      %s20 = sadd.s32 1, %s16
    $region7: #{tpu_custom_call.1} parent=1 // loop_footer_branch
      %15 = sbr.rel target = $region3
    $region8: #{tpu_custom_call.1} parent=1 // loop_exit
      _
    %1461 = vsyncpa [#allocation4], 1
    %s1462 = scalar_lea.sflag [#allocation4], 1
    %1463 = vsyncpa %s1462, 1
    %1464 = vsyncpa [#allocation6], 1

</llo_original>
